<compile_context>
chip_gen: v5e
topology: v5e:2x2
jax: 0.10.0
libtpu: 0.0.40
codegen_flags: <defaults>
</compile_context>

<pallas_src>
import functools

import jax
import jax.numpy as jnp
from jax.experimental import pallas as pl
from jax.experimental.pallas import tpu as pltpu


def _round_up(x, m):
    return ((x + m - 1) // m) * m


def _choose_b_tile(B):
    """Batch tile choice.

    Small B: one minimal-pad tile (multiple of 8 sublanes, single grid step).
    Large B: a 128-multiple MXU-row tile from {512, 256, 128} minimizing padded
    rows, preferring the larger tile on ties (amortizes ~0.35us/grid-step
    overhead; per-block activations are only a few MiB even at H_pad=1024).
    """
    B8 = _round_up(B, 8)
    if B8 <= 256:
        return B8
    best_t, best_pad = None, None
    for t in (512, 256, 128):
        pad = _round_up(B, t) - B
        if best_pad is None or pad < best_pad:
            best_t, best_pad = t, pad
    return best_t


# ----------------------------------------------------------------------------
# Kernel: one LSTM decode step (in_layer + LeakyReLU + LSTM cell + out_layer).
# All refs are padded, lane/sublane aligned. Weights bf16, accumulation f32.
# Gate columns of w_ih/w_hh are pre-ordered [i, f, o, g], each gate occupying a
# full lane-aligned Hp-wide block (one wide sigmoid + lane-aligned tanh tail).
# ----------------------------------------------------------------------------
def baseline_step_kernel(emb_ref, h0_ref, c0_ref,
                         w_in_ref, b_in_ref,
                         w_ih_ref, w_hh_ref,
                         w_out_ref, b_out_ref,
                         logits_ref, h_ref, c_ref):
    Hp = h0_ref.shape[-1]

    emb = emb_ref[...]                        # (Bt, Ep)  bf16
    h0 = h0_ref[...]                          # (Bt, Hp)  f32
    c0 = c0_ref[...]                          # (Bt, Hp)  f32

    # in_layer + LeakyReLU(0.1); bf16 x bf16 -> f32 accumulate on the MXU.
    x = jnp.dot(emb, w_in_ref[...], preferred_element_type=jnp.float32) + b_in_ref[...]
    x = jnp.maximum(x, 0.1 * x)               # LeakyReLU(0.1), vmul+vmax

    # Two accumulated gate matmuls (no concat / staging buffer).
    gates = (jnp.dot(x.astype(jnp.bfloat16), w_ih_ref[...],
                     preferred_element_type=jnp.float32)
             + jnp.dot(h0.astype(jnp.bfloat16), w_hh_ref[...],
                       preferred_element_type=jnp.float32))     # (Bt, 4*Hp) f32

    # Gate order in weight columns: [i, f, o, g] -> one wide sigmoid, one tanh.
    sig = jax.nn.sigmoid(gates[:, :3 * Hp])
    i_g = sig[:, 0 * Hp:1 * Hp]
    f_g = sig[:, 1 * Hp:2 * Hp]
    o_g = sig[:, 2 * Hp:3 * Hp]
    g_g = jnp.tanh(gates[:, 3 * Hp:])

    c = f_g * c0 + i_g * g_g
    h = o_g * jnp.tanh(c)

    logits_ref[...] = (jnp.dot(h.astype(jnp.bfloat16), w_out_ref[...],
                               preferred_element_type=jnp.float32)
                       + b_out_ref[...])
    h_ref[...] = h
    c_ref[...] = c


# ----------------------------------------------------------------------------
# pallas_call builder (cached per-shape) + single-buffer-weights fallback.
# ----------------------------------------------------------------------------
_SINGLE_BUFFER_WEIGHTS = True   # flipped off if pl.Buffered(1) is rejected


@functools.lru_cache(maxsize=None)
def _build_step_call(B_tile, n_tiles, E_pad, H_pad, O_pad, single_buffer_weights):
    B_pad = B_tile * n_tiles

    def wspec(rows, cols):
        # Grid-invariant weights: index_map is constant, so double-buffering
        # only doubles VMEM; request a single buffer when supported.
        if single_buffer_weights:
            return pl.BlockSpec((rows, cols), lambda i: (0, 0),
                                pipeline_mode=pl.Buffered(1))
        return pl.BlockSpec((rows, cols), lambda i: (0, 0))

    # VMEM budget sized from the actual blocks (weights x1 or x2, activations
    # and outputs double-buffered, f32 temporaries), with 2x headroom, clamped
    # to 64 MiB (safe on every chip incl. v7x's 64 MiB physical VMEM).
    weight_bytes = ((E_pad * H_pad + 2 * H_pad * 4 * H_pad + H_pad * O_pad) * 2
                    + (H_pad + O_pad) * 4)
    act_bytes = B_tile * (E_pad * 2 + 2 * H_pad * 4)          # emb + h0 + c0
    out_bytes = B_tile * (O_pad * 4 + 2 * H_pad * 4)          # logits + h + c
    tmp_bytes = B_tile * (4 * H_pad + 2 * H_pad) * 4          # gates + x/h live f32
    need = (weight_bytes * (1 if single_buffer_weights else 2)
            + 2 * (act_bytes + out_bytes) + tmp_bytes)
    vmem_limit = int(min(max(2 * need, 32 * 1024 * 1024), 64 * 1024 * 1024))

    flops = 2 * B_pad * (E_pad * H_pad + 2 * H_pad * 4 * H_pad + H_pad * O_pad)
    transcendentals = B_pad * 5 * H_pad
    bytes_accessed = weight_bytes + n_tiles * (act_bytes + out_bytes)

    return pl.pallas_call(
        baseline_step_kernel,
        out_shape=(jax.ShapeDtypeStruct((B_pad, O_pad), jnp.float32),
                   jax.ShapeDtypeStruct((B_pad, H_pad), jnp.float32),
                   jax.ShapeDtypeStruct((B_pad, H_pad), jnp.float32)),
        grid_spec=pltpu.PrefetchScalarGridSpec(
            num_scalar_prefetch=0,
            grid=(n_tiles,),
            in_specs=[
                pl.BlockSpec((B_tile, E_pad), lambda i: (i, 0)),        # emb
                pl.BlockSpec((B_tile, H_pad), lambda i: (i, 0)),        # h0
                pl.BlockSpec((B_tile, H_pad), lambda i: (i, 0)),        # c0
                wspec(E_pad, H_pad),                                    # w_in
                wspec(1, H_pad),                                        # b_in
                wspec(H_pad, 4 * H_pad),                                # w_ih
                wspec(H_pad, 4 * H_pad),                                # w_hh
                wspec(H_pad, O_pad),                                    # w_out
                wspec(1, O_pad),                                        # b_out
            ],
            out_specs=(
                pl.BlockSpec((B_tile, O_pad), lambda i: (i, 0)),
                pl.BlockSpec((B_tile, H_pad), lambda i: (i, 0)),
                pl.BlockSpec((B_tile, H_pad), lambda i: (i, 0)),
            ),
        ),
        compiler_params=pltpu.CompilerParams(
            dimension_semantics=("parallel",),
            vmem_limit_bytes=vmem_limit),
        cost_estimate=pl.CostEstimate(flops=flops,
                                      transcendentals=transcendentals,
                                      bytes_accessed=bytes_accessed),
    )


def _run_step(args, B_tile, n_tiles, E_pad, H_pad, O_pad):
    global _SINGLE_BUFFER_WEIGHTS
    if _SINGLE_BUFFER_WEIGHTS:
        try:
            return _build_step_call(B_tile, n_tiles, E_pad, H_pad, O_pad, True)(*args)
        except Exception:
            _SINGLE_BUFFER_WEIGHTS = False   # fall back to default buffering
    return _build_step_call(B_tile, n_tiles, E_pad, H_pad, O_pad, False)(*args)


# ----------------------------------------------------------------------------
# One-time parameter preparation (padding, gate reorder, bf16 cast). Glue.
# ----------------------------------------------------------------------------
def prepare_params(raw, hidden_dim, out_dim):
    H, O = hidden_dim, out_dim
    E = raw["w_in"].shape[0]                       # in_dim (== out_dim here)
    H_pad = _round_up(H, 128)
    E_pad = _round_up(E, 128)
    O_pad = _round_up(O, 128)

    def pad2(a, rows, cols, dtype):
        out = jnp.zeros((rows, cols), dtype)
        return out.at[:a.shape[0], :a.shape[1]].set(a.astype(dtype))

    def gate_reorder_pad(w):
        # w: (H, 4H), (in, out) layout, PyTorch gate order i, f, g, o.
        # Reorder columns to [i, f, o, g]; each gate padded to a full Hp block.
        # If H % 128 == 0 this is a pure column permutation (no extra lanes).
        blocks = (w[:, 0 * H:1 * H], w[:, 1 * H:2 * H],
                  w[:, 3 * H:4 * H], w[:, 2 * H:3 * H])
        out = jnp.zeros((H_pad, 4 * H_pad), jnp.bfloat16)
        for k, blk in enumerate(blocks):
            out = out.at[:H, k * H_pad:k * H_pad + H].set(blk.astype(jnp.bfloat16))
        return out

    # bf16, lane-padded embedding table: per-step gather is lane-dense and
    # needs no per-call cast/pad.
    emb_tab = jnp.zeros((raw["embedding"].shape[0], E_pad), jnp.bfloat16)
    emb_tab = emb_tab.at[:, :E].set(raw["embedding"].astype(jnp.bfloat16))

    return {
        "embedding": emb_tab,                          # (vocab, E_pad) bf16
        "w_in": pad2(raw["w_in"], E_pad, H_pad, jnp.bfloat16),
        "b_in": pad2(raw["b_in"], 1, H_pad, jnp.float32),
        "w_ih": gate_reorder_pad(raw["w_ih"]),         # (Hp, 4Hp) bf16
        "w_hh": gate_reorder_pad(raw["w_hh"]),         # (Hp, 4Hp) bf16
        "w_out": pad2(raw["w_out"], H_pad, O_pad, jnp.bfloat16),
        "b_out": pad2(raw["b_out"], 1, O_pad, jnp.float32),
        "dims": (E, H, O, E_pad, H_pad, O_pad),
    }


# ----------------------------------------------------------------------------
# Forward wrappers.
# ----------------------------------------------------------------------------
def _pad_rows(a, rows):
    return jnp.zeros((rows,) + a.shape[1:], a.dtype).at[:a.shape[0]].set(a)


def pad_hidden(hidden, prep, batch):
    """PyTorch-shaped hidden ((1,B,H),(1,B,H)) or None -> padded (B_pad,H_pad) f32 pair."""
    _, H, _, _, H_pad, _ = prep["dims"]
    B_tile = _choose_b_tile(batch)
    B_pad = _round_up(batch, B_tile)
    if hidden is None:
        z = jnp.zeros((B_pad, H_pad), jnp.float32)
        return z, z
    h0, c0 = hidden
    h0_p = jnp.zeros((B_pad, H_pad), jnp.float32).at[:batch, :H].set(
        h0.reshape(batch, H).astype(jnp.float32))
    c0_p = jnp.zeros((B_pad, H_pad), jnp.float32).at[:batch, :H].set(
        c0.reshape(batch, H).astype(jnp.float32))
    return h0_p, c0_p


def baseline_forward_padded(event, hidden_padded, prep, batch):
    """Fast path for generate()-style loops.

    event: (1, B) int32; hidden_padded: (h0_p, c0_p) each (B_pad, H_pad) f32.
    Returns (logits (1, B, O) f32, padded (h_p, c_p)). The padded state can be
    fed straight back in (padded lanes/rows stay exactly 0 across steps).
    """
    E, H, O, E_pad, H_pad, O_pad = prep["dims"]
    B = batch
    B_tile = _choose_b_tile(B)
    B_pad = _round_up(B, B_tile)
    h0_p, c0_p = hidden_padded
    assert h0_p.shape == (B_pad, H_pad) and c0_p.shape == (B_pad, H_pad)

    # Lane-dense bf16 row gather from the prepared table; only rows need padding.
    emb_p = _pad_rows(prep["embedding"][event[0]], B_pad)       # (B_pad, E_pad)

    logits_p, h_p, c_p = _run_step(
        (emb_p, h0_p, c0_p,
         prep["w_in"], prep["b_in"], prep["w_ih"], prep["w_hh"],
         prep["w_out"], prep["b_out"]),
        B_tile, B_pad // B_tile, E_pad, H_pad, O_pad)

    return logits_p[:B, :O][None], (h_p, c_p)


def baseline_forward(event, hidden, prep):
    """PyTorch-compatible forward: event (1,B) int; hidden ((1,B,H),(1,B,H)) or None.
    Returns (logits (1,B,out_dim), (h_n, c_n) each (1,B,H))."""
    assert event.ndim == 2 and event.shape[0] == 1
    _, H, _, _, _, _ = prep["dims"]
    B = event.shape[1]
    state = pad_hidden(hidden, prep, B)
    logits, (h_p, c_p) = baseline_forward_padded(event, state, prep, B)
    return logits, (h_p[:B, :H][None], c_p[:B, :H][None])


def init_to_hidden(init, raw):
    """init_layer + tanh, reshaped to (num_layers*num_directions, B, H). Glue."""
    out = jnp.tanh(init @ raw["w_init"] + raw["b_init"])          # (B, H)
    return out[None], out[None]


def make_params(key, in_dim, hidden_dim, out_dim, init_dim):
    """Deterministic xavier-normal-ish init. Weights stored as (in, out), f32."""
    ks = jax.random.split(key, 9)

    def xavier(k, fan_in, fan_out, shape):
        std = (2.0 / (fan_in + fan_out)) ** 0.5
        return (std * jax.random.normal(k, shape)).astype(jnp.float32)

    H = hidden_dim
    return {
        "embedding": xavier(ks[0], out_dim, out_dim, (out_dim, out_dim)),
        "w_init": xavier(ks[1], init_dim, H, (init_dim, H)),
        "b_init": xavier(ks[2], 1, H, (1, H)),
        "w_in": xavier(ks[3], in_dim, H, (in_dim, H)),
        "b_in": xavier(ks[4], 1, H, (1, H)),
        "w_ih": xavier(ks[5], H, 4 * H, (H, 4 * H)),   # PyTorch weight_ih_l0.T
        "w_hh": xavier(ks[6], H, 4 * H, (H, 4 * H)),   # PyTorch weight_hh_l0.T
        "w_out": xavier(ks[7], H, out_dim, (H, out_dim)),
        "b_out": xavier(ks[8], 1, out_dim, (1, out_dim)),
    }


def _reference_forward(event, hidden, raw):
    """Pure-JAX reference mirroring the kernel's bf16 weight/activation casts."""
    q = lambda a: a.astype(jnp.bfloat16).astype(jnp.float32)   # bf16 quantize
    emb = q(raw["embedding"][event[0]])
    x = emb @ q(raw["w_in"]) + raw["b_in"]
    x = jnp.where(x > 0, x, 0.1 * x)
    h0, c0 = hidden
    h0, c0 = h0[0], c0[0]
    gates = q(x) @ q(raw["w_ih"]) + q(h0) @ q(raw["w_hh"])
    H = h0.shape[-1]
    i = jax.nn.sigmoid(gates[:, :H])
    f = jax.nn.sigmoid(gates[:, H:2 * H])
    g = jnp.tanh(gates[:, 2 * H:3 * H])
    o = jax.nn.sigmoid(gates[:, 3 * H:])
    c = f * c0 + i * g
    h = o * jnp.tanh(c)
    logits = q(h) @ q(raw["w_out"]) + raw["b_out"]
    return logits[None], (h[None], c[None])


if __name__ == "__main__":
    # Small shapes consistent with the module: forward requires in_dim == out_dim
    # (embedding output feeds in_layer directly).
    B = 2
    H = 32          # hidden_dim
    O = 64          # out_dim == in_dim
    INIT = 32       # init_dim

    key = jax.random.PRNGKey(0)
    kp, ki = jax.random.split(key, 2)
    raw = make_params(kp, in_dim=O, hidden_dim=H, out_dim=O, init_dim=INIT)
    prep = prepare_params(raw, hidden_dim=H, out_dim=O)

    # init -> hidden state (as in generate()/init_to_hidden), then one forward step.
    init = jax.random.normal(ki, (B, INIT), jnp.float32)
    hidden = init_to_hidden(init, raw)

    # primary event = out_dim - 1, shape (1, B)
    event = jnp.full((1, B), O - 1, dtype=jnp.int32)

    logits, (h_n, c_n) = baseline_forward(event, hidden, prep)
    jax.block_until_ready((logits, h_n, c_n))

    ref_logits, (ref_h, ref_c) = _reference_forward(event, hidden, raw)
    assert logits.shape == (1, B, O)
    assert h_n.shape == (1, B, H) and c_n.shape == (1, B, H)
    assert jnp.allclose(logits, ref_logits, atol=2e-3, rtol=2e-3)
    assert jnp.allclose(h_n, ref_h, atol=2e-3, rtol=2e-3)
    assert jnp.allclose(c_n, ref_c, atol=2e-3, rtol=2e-3)

    # hidden=None (zero-state) path.
    zero_hidden = (jnp.zeros((1, B, H), jnp.float32),
                   jnp.zeros((1, B, H), jnp.float32))
    logits0, (h0_out, c0_out) = baseline_forward(event, None, prep)
    ref0_logits, (ref0_h, ref0_c) = _reference_forward(event, zero_hidden, raw)
    assert jnp.allclose(logits0, ref0_logits, atol=2e-3, rtol=2e-3)
    assert jnp.allclose(h0_out, ref0_h, atol=2e-3, rtol=2e-3)
    assert jnp.allclose(c0_out, ref0_c, atol=2e-3, rtol=2e-3)

    # generate()-style 2-step (teacher-forced) decode on the padded-state fast
    # path: state stays padded across steps, no per-step pad/slice of h/c.
    state = pad_hidden(hidden, prep, B)
    ref_hidden = hidden
    events_seq = [jnp.full((1, B), O - 1, dtype=jnp.int32),
                  (jnp.arange(B, dtype=jnp.int32) % O)[None]]
    for ev in events_seq:
        step_logits, state = baseline_forward_padded(ev, state, prep, B)
        r_logits, ref_hidden = _reference_forward(ev, ref_hidden, raw)
        assert jnp.allclose(step_logits, r_logits, atol=5e-3, rtol=5e-3)
    assert jnp.allclose(state[0][:B, :H][None], ref_hidden[0], atol=5e-3, rtol=5e-3)
    assert jnp.allclose(state[1][:B, :H][None], ref_hidden[1], atol=5e-3, rtol=5e-3)
    jax.block_until_ready(state)

    print("KERNEL_OK")
</pallas_src>

<mosaic_0001>
module attributes {stable_mosaic.version = 11 : i64} {
  func.func @baseline_step_kernel(%arg0: i32, %arg1: memref<8x128xbf16, #tpu.memory_space<vmem>>, %arg2: memref<8x128xf32, #tpu.memory_space<vmem>>, %arg3: memref<8x128xf32, #tpu.memory_space<vmem>>, %arg4: memref<128x128xbf16, #tpu.memory_space<vmem>>, %arg5: memref<1x128xf32, #tpu.memory_space<vmem>>, %arg6: memref<128x512xbf16, #tpu.memory_space<vmem>>, %arg7: memref<128x512xbf16, #tpu.memory_space<vmem>>, %arg8: memref<128x128xbf16, #tpu.memory_space<vmem>>, %arg9: memref<1x128xf32, #tpu.memory_space<vmem>>, %arg10: memref<8x128xf32, #tpu.memory_space<vmem>>, %arg11: memref<8x128xf32, #tpu.memory_space<vmem>>, %arg12: memref<8x128xf32, #tpu.memory_space<vmem>>) attributes {dimension_semantics = [#tpu.dimension_semantics<parallel>], iteration_bounds = array<i64: 1>, scalar_prefetch = 0 : i64, scratch_operands = 0 : i64, tpu.core_type = #tpu.core_type<tc>, window_params = [{transform_indices = @transform_0, window_bounds = array<i64: 8, 128>}, {transform_indices = @transform_1, window_bounds = array<i64: 8, 128>}, {transform_indices = @transform_2, window_bounds = array<i64: 8, 128>}, {pipeline_mode = #tpu.pipeline_mode<synchronous>, transform_indices = @transform_3, window_bounds = array<i64: 128, 128>}, {pipeline_mode = #tpu.pipeline_mode<synchronous>, transform_indices = @transform_4, window_bounds = array<i64: 1, 128>}, {pipeline_mode = #tpu.pipeline_mode<synchronous>, transform_indices = @transform_5, window_bounds = array<i64: 128, 512>}, {pipeline_mode = #tpu.pipeline_mode<synchronous>, transform_indices = @transform_6, window_bounds = array<i64: 128, 512>}, {pipeline_mode = #tpu.pipeline_mode<synchronous>, transform_indices = @transform_7, window_bounds = array<i64: 128, 128>}, {pipeline_mode = #tpu.pipeline_mode<synchronous>, transform_indices = @transform_8, window_bounds = array<i64: 1, 128>}, {transform_indices = @transform_9, window_bounds = array<i64: 8, 128>}, {transform_indices = @transform_10, window_bounds = array<i64: 8, 128>}, {transform_indices = @transform_11, window_bounds = array<i64: 8, 128>}]} {
    %c0 = arith.constant 0 : index
    %c0_0 = arith.constant 0 : index
    %0 = vector.load %arg1[%c0, %c0_0] : memref<8x128xbf16, #tpu.memory_space<vmem>>, vector<8x128xbf16>
    %c0_1 = arith.constant 0 : index
    %c0_2 = arith.constant 0 : index
    %1 = vector.load %arg2[%c0_1, %c0_2] : memref<8x128xf32, #tpu.memory_space<vmem>>, vector<8x128xf32>
    %c0_3 = arith.constant 0 : index
    %c0_4 = arith.constant 0 : index
    %2 = vector.load %arg3[%c0_3, %c0_4] : memref<8x128xf32, #tpu.memory_space<vmem>>, vector<8x128xf32>
    %c0_5 = arith.constant 0 : index
    %c0_6 = arith.constant 0 : index
    %3 = vector.load %arg4[%c0_5, %c0_6] : memref<128x128xbf16, #tpu.memory_space<vmem>>, vector<128x128xbf16>
    %cst = arith.constant dense<0.000000e+00> : vector<8x128xf32>
    %4 = tpu.matmul %0, %3, %cst {dimension_numbers = #tpu.dot_dimension_numbers<[1], [0], [0], [1], [0, 0, 1, 1], [], []>} : vector<8x128xbf16>, vector<128x128xbf16>, vector<8x128xf32> -> vector<8x128xf32>
    %c0_7 = arith.constant 0 : index
    %c0_8 = arith.constant 0 : index
    %5 = vector.load %arg5[%c0_7, %c0_8] : memref<1x128xf32, #tpu.memory_space<vmem>>, vector<1x128xf32>
    %6 = vector.broadcast %5 : vector<1x128xf32> to vector<8x128xf32>
    %7 = arith.addf %4, %6 : vector<8x128xf32>
    %cst_9 = arith.constant 1.000000e-01 : f32
    %8 = vector.broadcast %cst_9 : f32 to vector<8x128xf32>
    %9 = arith.mulf %8, %7 : vector<8x128xf32>
    %10 = arith.maximumf %7, %9 : vector<8x128xf32>
    %11 = arith.truncf %10 : vector<8x128xf32> to vector<8x128xbf16>
    %c0_10 = arith.constant 0 : index
    %c0_11 = arith.constant 0 : index
    %12 = vector.load %arg6[%c0_10, %c0_11] : memref<128x512xbf16, #tpu.memory_space<vmem>>, vector<128x512xbf16>
    %cst_12 = arith.constant dense<0.000000e+00> : vector<8x512xf32>
    %13 = tpu.matmul %11, %12, %cst_12 {dimension_numbers = #tpu.dot_dimension_numbers<[1], [0], [0], [1], [0, 0, 1, 1], [], []>} : vector<8x128xbf16>, vector<128x512xbf16>, vector<8x512xf32> -> vector<8x512xf32>
    %14 = arith.truncf %1 : vector<8x128xf32> to vector<8x128xbf16>
    %c0_13 = arith.constant 0 : index
    %c0_14 = arith.constant 0 : index
    %15 = vector.load %arg7[%c0_13, %c0_14] : memref<128x512xbf16, #tpu.memory_space<vmem>>, vector<128x512xbf16>
    %cst_15 = arith.constant dense<0.000000e+00> : vector<8x512xf32>
    %16 = tpu.matmul %14, %15, %cst_15 {dimension_numbers = #tpu.dot_dimension_numbers<[1], [0], [0], [1], [0, 0, 1, 1], [], []>} : vector<8x128xbf16>, vector<128x512xbf16>, vector<8x512xf32> -> vector<8x512xf32>
    %17 = arith.addf %13, %16 : vector<8x512xf32>
    %18 = vector.extract_strided_slice %17 {offsets = [0, 0], sizes = [8, 384], strides = [1, 1]} : vector<8x512xf32> to vector<8x384xf32>
    %19 = arith.negf %18 : vector<8x384xf32>
    %20 = math.exp %19 : vector<8x384xf32>
    %cst_16 = arith.constant 1.000000e+00 : f32
    %21 = vector.broadcast %cst_16 : f32 to vector<8x384xf32>
    %22 = arith.addf %21, %20 : vector<8x384xf32>
    %23 = arith.divf %21, %22 : vector<8x384xf32>
    %24 = vector.extract_strided_slice %23 {offsets = [0, 0], sizes = [8, 128], strides = [1, 1]} : vector<8x384xf32> to vector<8x128xf32>
    %25 = vector.extract_strided_slice %23 {offsets = [0, 128], sizes = [8, 128], strides = [1, 1]} : vector<8x384xf32> to vector<8x128xf32>
    %26 = vector.extract_strided_slice %23 {offsets = [0, 256], sizes = [8, 128], strides = [1, 1]} : vector<8x384xf32> to vector<8x128xf32>
    %27 = vector.extract_strided_slice %17 {offsets = [0, 384], sizes = [8, 128], strides = [1, 1]} : vector<8x512xf32> to vector<8x128xf32>
    %28 = math.tanh %27 : vector<8x128xf32>
    %29 = arith.mulf %25, %2 : vector<8x128xf32>
    %30 = arith.mulf %24, %28 : vector<8x128xf32>
    %31 = arith.addf %29, %30 : vector<8x128xf32>
    %32 = math.tanh %31 : vector<8x128xf32>
    %33 = arith.mulf %26, %32 : vector<8x128xf32>
    %34 = arith.truncf %33 : vector<8x128xf32> to vector<8x128xbf16>
    %c0_17 = arith.constant 0 : index
    %c0_18 = arith.constant 0 : index
    %35 = vector.load %arg8[%c0_17, %c0_18] : memref<128x128xbf16, #tpu.memory_space<vmem>>, vector<128x128xbf16>
    %cst_19 = arith.constant dense<0.000000e+00> : vector<8x128xf32>
    %36 = tpu.matmul %34, %35, %cst_19 {dimension_numbers = #tpu.dot_dimension_numbers<[1], [0], [0], [1], [0, 0, 1, 1], [], []>} : vector<8x128xbf16>, vector<128x128xbf16>, vector<8x128xf32> -> vector<8x128xf32>
    %c0_20 = arith.constant 0 : index
    %c0_21 = arith.constant 0 : index
    %37 = vector.load %arg9[%c0_20, %c0_21] : memref<1x128xf32, #tpu.memory_space<vmem>>, vector<1x128xf32>
    %38 = vector.broadcast %37 : vector<1x128xf32> to vector<8x128xf32>
    %39 = arith.addf %36, %38 : vector<8x128xf32>
    %c0_22 = arith.constant 0 : index
    %c0_23 = arith.constant 0 : index
    %40 = vector.load %arg10[%c0_22, %c0_23] : memref<8x128xf32, #tpu.memory_space<vmem>>, vector<8x128xf32>
    tpu.vector_store %arg10[%c0_22, %c0_23], %39 {strides = array<i32>} : memref<8x128xf32, #tpu.memory_space<vmem>>, vector<8x128xf32>,
    %c0_24 = arith.constant 0 : index
    %c0_25 = arith.constant 0 : index
    %41 = vector.load %arg11[%c0_24, %c0_25] : memref<8x128xf32, #tpu.memory_space<vmem>>, vector<8x128xf32>
    tpu.vector_store %arg11[%c0_24, %c0_25], %33 {strides = array<i32>} : memref<8x128xf32, #tpu.memory_space<vmem>>, vector<8x128xf32>,
    %c0_26 = arith.constant 0 : index
    %c0_27 = arith.constant 0 : index
    %42 = vector.load %arg12[%c0_26, %c0_27] : memref<8x128xf32, #tpu.memory_space<vmem>>, vector<8x128xf32>
    tpu.vector_store %arg12[%c0_26, %c0_27], %31 {strides = array<i32>} : memref<8x128xf32, #tpu.memory_space<vmem>>, vector<8x128xf32>,
    return
  }
  func.func @transform_0(%arg0: i32) -> (i32, i32) {
    %c0_i32 = arith.constant 0 : i32
    %c0_i32_0 = arith.constant 0 : i32
    return %arg0, %c0_i32 : i32, i32
  }
  func.func @transform_1(%arg0: i32) -> (i32, i32) {
    %c0_i32 = arith.constant 0 : i32
    %c0_i32_0 = arith.constant 0 : i32
    return %arg0, %c0_i32 : i32, i32
  }
  func.func @transform_2(%arg0: i32) -> (i32, i32) {
    %c0_i32 = arith.constant 0 : i32
    %c0_i32_0 = arith.constant 0 : i32
    return %arg0, %c0_i32 : i32, i32
  }
  func.func @transform_3(%arg0: i32) -> (i32, i32) {
    %c0_i32 = arith.constant 0 : i32
    %c0_i32_0 = arith.constant 0 : i32
    %c0_i32_1 = arith.constant 0 : i32
    return %c0_i32, %c0_i32_0 : i32, i32
  }
  func.func @transform_4(%arg0: i32) -> (i32, i32) {
    %c0_i32 = arith.constant 0 : i32
    %c0_i32_0 = arith.constant 0 : i32
    %c0_i32_1 = arith.constant 0 : i32
    return %c0_i32, %c0_i32_0 : i32, i32
  }
  func.func @transform_5(%arg0: i32) -> (i32, i32) {
    %c0_i32 = arith.constant 0 : i32
    %c0_i32_0 = arith.constant 0 : i32
    %c0_i32_1 = arith.constant 0 : i32
    return %c0_i32, %c0_i32_0 : i32, i32
  }
  func.func @transform_6(%arg0: i32) -> (i32, i32) {
    %c0_i32 = arith.constant 0 : i32
    %c0_i32_0 = arith.constant 0 : i32
    %c0_i32_1 = arith.constant 0 : i32
    return %c0_i32, %c0_i32_0 : i32, i32
  }
  func.func @transform_7(%arg0: i32) -> (i32, i32) {
    %c0_i32 = arith.constant 0 : i32
    %c0_i32_0 = arith.constant 0 : i32
    %c0_i32_1 = arith.constant 0 : i32
    return %c0_i32, %c0_i32_0 : i32, i32
  }
  func.func @transform_8(%arg0: i32) -> (i32, i32) {
    %c0_i32 = arith.constant 0 : i32
    %c0_i32_0 = arith.constant 0 : i32
    %c0_i32_1 = arith.constant 0 : i32
    return %c0_i32, %c0_i32_0 : i32, i32
  }
  func.func @transform_9(%arg0: i32) -> (i32, i32) {
    %c0_i32 = arith.constant 0 : i32
    %c0_i32_0 = arith.constant 0 : i32
    return %arg0, %c0_i32 : i32, i32
  }
  func.func @transform_10(%arg0: i32) -> (i32, i32) {
    %c0_i32 = arith.constant 0 : i32
    %c0_i32_0 = arith.constant 0 : i32
    return %arg0, %c0_i32 : i32, i32
  }
  func.func @transform_11(%arg0: i32) -> (i32, i32) {
    %c0_i32 = arith.constant 0 : i32
    %c0_i32_0 = arith.constant 0 : i32
    return %arg0, %c0_i32 : i32, i32
  }
}

module attributes {stable_mosaic.version = 11 : i64} {
  func.func @baseline_step_kernel(%arg0: i32, %arg1: memref<8x128xbf16, #tpu.memory_space<vmem>>, %arg2: memref<8x128xf32, #tpu.memory_space<vmem>>, %arg3: memref<8x128xf32, #tpu.memory_space<vmem>>, %arg4: memref<128x128xbf16, #tpu.memory_space<vmem>>, %arg5: memref<1x128xf32, #tpu.memory_space<vmem>>, %arg6: memref<128x512xbf16, #tpu.memory_space<vmem>>, %arg7: memref<128x512xbf16, #tpu.memory_space<vmem>>, %arg8: memref<128x128xbf16, #tpu.memory_space<vmem>>, %arg9: memref<1x128xf32, #tpu.memory_space<vmem>>, %arg10: memref<8x128xf32, #tpu.memory_space<vmem>>, %arg11: memref<8x128xf32, #tpu.memory_space<vmem>>, %arg12: memref<8x128xf32, #tpu.memory_space<vmem>>) attributes {dimension_semantics = [#tpu.dimension_semantics<parallel>], iteration_bounds = array<i64: 1>, scalar_prefetch = 0 : i64, scratch_operands = 0 : i64, tpu.core_type = #tpu.core_type<tc>, window_params = [{transform_indices = @transform_0, window_bounds = array<i64: 8, 128>}, {transform_indices = @transform_1, window_bounds = array<i64: 8, 128>}, {transform_indices = @transform_2, window_bounds = array<i64: 8, 128>}, {pipeline_mode = #tpu.pipeline_mode<synchronous>, transform_indices = @transform_3, window_bounds = array<i64: 128, 128>}, {pipeline_mode = #tpu.pipeline_mode<synchronous>, transform_indices = @transform_4, window_bounds = array<i64: 1, 128>}, {pipeline_mode = #tpu.pipeline_mode<synchronous>, transform_indices = @transform_5, window_bounds = array<i64: 128, 512>}, {pipeline_mode = #tpu.pipeline_mode<synchronous>, transform_indices = @transform_6, window_bounds = array<i64: 128, 512>}, {pipeline_mode = #tpu.pipeline_mode<synchronous>, transform_indices = @transform_7, window_bounds = array<i64: 128, 128>}, {pipeline_mode = #tpu.pipeline_mode<synchronous>, transform_indices = @transform_8, window_bounds = array<i64: 1, 128>}, {transform_indices = @transform_9, window_bounds = array<i64: 8, 128>}, {transform_indices = @transform_10, window_bounds = array<i64: 8, 128>}, {transform_indices = @transform_11, window_bounds = array<i64: 8, 128>}]} {
    %c0 = arith.constant 0 : index
    %c0_0 = arith.constant 0 : index
    %0 = vector.load %arg1[%c0, %c0_0] : memref<8x128xbf16, #tpu.memory_space<vmem>>, vector<8x128xbf16>
    %c0_1 = arith.constant 0 : index
    %c0_2 = arith.constant 0 : index
    %1 = vector.load %arg2[%c0_1, %c0_2] : memref<8x128xf32, #tpu.memory_space<vmem>>, vector<8x128xf32>
    %c0_3 = arith.constant 0 : index
    %c0_4 = arith.constant 0 : index
    %2 = vector.load %arg3[%c0_3, %c0_4] : memref<8x128xf32, #tpu.memory_space<vmem>>, vector<8x128xf32>
    %c0_5 = arith.constant 0 : index
    %c0_6 = arith.constant 0 : index
    %3 = vector.load %arg4[%c0_5, %c0_6] : memref<128x128xbf16, #tpu.memory_space<vmem>>, vector<128x128xbf16>
    %cst = arith.constant dense<0.000000e+00> : vector<8x128xf32>
    %4 = tpu.matmul %0, %3, %cst {dimension_numbers = #tpu.dot_dimension_numbers<[1], [0], [0], [1], [0, 0, 1, 1], [], []>} : vector<8x128xbf16>, vector<128x128xbf16>, vector<8x128xf32> -> vector<8x128xf32>
    %c0_7 = arith.constant 0 : index
    %c0_8 = arith.constant 0 : index
    %5 = vector.load %arg5[%c0_7, %c0_8] : memref<1x128xf32, #tpu.memory_space<vmem>>, vector<1x128xf32>
    %6 = vector.broadcast %5 : vector<1x128xf32> to vector<8x128xf32>
    %7 = arith.addf %4, %6 : vector<8x128xf32>
    %cst_9 = arith.constant 1.000000e-01 : f32
    %8 = vector.broadcast %cst_9 : f32 to vector<8x128xf32>
    %9 = arith.mulf %8, %7 : vector<8x128xf32>
    %10 = arith.maximumf %7, %9 : vector<8x128xf32>
    %11 = arith.truncf %10 : vector<8x128xf32> to vector<8x128xbf16>
    %c0_10 = arith.constant 0 : index
    %c0_11 = arith.constant 0 : index
    %12 = vector.load %arg6[%c0_10, %c0_11] : memref<128x512xbf16, #tpu.memory_space<vmem>>, vector<128x512xbf16>
    %cst_12 = arith.constant dense<0.000000e+00> : vector<8x512xf32>
    %13 = tpu.matmul %11, %12, %cst_12 {dimension_numbers = #tpu.dot_dimension_numbers<[1], [0], [0], [1], [0, 0, 1, 1], [], []>} : vector<8x128xbf16>, vector<128x512xbf16>, vector<8x512xf32> -> vector<8x512xf32>
    %14 = arith.truncf %1 : vector<8x128xf32> to vector<8x128xbf16>
    %c0_13 = arith.constant 0 : index
    %c0_14 = arith.constant 0 : index
    %15 = vector.load %arg7[%c0_13, %c0_14] : memref<128x512xbf16, #tpu.memory_space<vmem>>, vector<128x512xbf16>
    %cst_15 = arith.constant dense<0.000000e+00> : vector<8x512xf32>
    %16 = tpu.matmul %14, %15, %cst_15 {dimension_numbers = #tpu.dot_dimension_numbers<[1], [0], [0], [1], [0, 0, 1, 1], [], []>} : vector<8x128xbf16>, vector<128x512xbf16>, vector<8x512xf32> -> vector<8x512xf32>
    %17 = arith.addf %13, %16 : vector<8x512xf32>
    %18 = vector.extract_strided_slice %17 {offsets = [0, 0], sizes = [8, 384], strides = [1, 1]} : vector<8x512xf32> to vector<8x384xf32>
    %19 = arith.negf %18 : vector<8x384xf32>
    %20 = math.exp %19 : vector<8x384xf32>
    %cst_16 = arith.constant 1.000000e+00 : f32
    %21 = vector.broadcast %cst_16 : f32 to vector<8x384xf32>
    %22 = arith.addf %21, %20 : vector<8x384xf32>
    %23 = arith.divf %21, %22 : vector<8x384xf32>
    %24 = vector.extract_strided_slice %23 {offsets = [0, 0], sizes = [8, 128], strides = [1, 1]} : vector<8x384xf32> to vector<8x128xf32>
    %25 = vector.extract_strided_slice %23 {offsets = [0, 128], sizes = [8, 128], strides = [1, 1]} : vector<8x384xf32> to vector<8x128xf32>
    %26 = vector.extract_strided_slice %23 {offsets = [0, 256], sizes = [8, 128], strides = [1, 1]} : vector<8x384xf32> to vector<8x128xf32>
    %27 = vector.extract_strided_slice %17 {offsets = [0, 384], sizes = [8, 128], strides = [1, 1]} : vector<8x512xf32> to vector<8x128xf32>
    %28 = math.tanh %27 : vector<8x128xf32>
    %29 = arith.mulf %25, %2 : vector<8x128xf32>
    %30 = arith.mulf %24, %28 : vector<8x128xf32>
    %31 = arith.addf %29, %30 : vector<8x128xf32>
    %32 = math.tanh %31 : vector<8x128xf32>
    %33 = arith.mulf %26, %32 : vector<8x128xf32>
    %34 = arith.truncf %33 : vector<8x128xf32> to vector<8x128xbf16>
    %c0_17 = arith.constant 0 : index
    %c0_18 = arith.constant 0 : index
    %35 = vector.load %arg8[%c0_17, %c0_18] : memref<128x128xbf16, #tpu.memory_space<vmem>>, vector<128x128xbf16>
    %cst_19 = arith.constant dense<0.000000e+00> : vector<8x128xf32>
    %36 = tpu.matmul %34, %35, %cst_19 {dimension_numbers = #tpu.dot_dimension_numbers<[1], [0], [0], [1], [0, 0, 1, 1], [], []>} : vector<8x128xbf16>, vector<128x128xbf16>, vector<8x128xf32> -> vector<8x128xf32>
    %c0_20 = arith.constant 0 : index
    %c0_21 = arith.constant 0 : index
    %37 = vector.load %arg9[%c0_20, %c0_21] : memref<1x128xf32, #tpu.memory_space<vmem>>, vector<1x128xf32>
    %38 = vector.broadcast %37 : vector<1x128xf32> to vector<8x128xf32>
    %39 = arith.addf %36, %38 : vector<8x128xf32>
    %c0_22 = arith.constant 0 : index
    %c0_23 = arith.constant 0 : index
    %40 = vector.load %arg10[%c0_22, %c0_23] : memref<8x128xf32, #tpu.memory_space<vmem>>, vector<8x128xf32>
    tpu.vector_store %arg10[%c0_22, %c0_23], %39 {strides = array<i32>} : memref<8x128xf32, #tpu.memory_space<vmem>>, vector<8x128xf32>,
    %c0_24 = arith.constant 0 : index
    %c0_25 = arith.constant 0 : index
    %41 = vector.load %arg11[%c0_24, %c0_25] : memref<8x128xf32, #tpu.memory_space<vmem>>, vector<8x128xf32>
    tpu.vector_store %arg11[%c0_24, %c0_25], %33 {strides = array<i32>} : memref<8x128xf32, #tpu.memory_space<vmem>>, vector<8x128xf32>,
    %c0_26 = arith.constant 0 : index
    %c0_27 = arith.constant 0 : index
    %42 = vector.load %arg12[%c0_26, %c0_27] : memref<8x128xf32, #tpu.memory_space<vmem>>, vector<8x128xf32>
    tpu.vector_store %arg12[%c0_26, %c0_27], %31 {strides = array<i32>} : memref<8x128xf32, #tpu.memory_space<vmem>>, vector<8x128xf32>,
    return
  }
  func.func @transform_0(%arg0: i32) -> (i32, i32) {
    %c0_i32 = arith.constant 0 : i32
    %c0_i32_0 = arith.constant 0 : i32
    return %arg0, %c0_i32 : i32, i32
  }
  func.func @transform_1(%arg0: i32) -> (i32, i32) {
    %c0_i32 = arith.constant 0 : i32
    %c0_i32_0 = arith.constant 0 : i32
    return %arg0, %c0_i32 : i32, i32
  }
  func.func @transform_2(%arg0: i32) -> (i32, i32) {
    %c0_i32 = arith.constant 0 : i32
    %c0_i32_0 = arith.constant 0 : i32
    return %arg0, %c0_i32 : i32, i32
  }
  func.func @transform_3(%arg0: i32) -> (i32, i32) {
    %c0_i32 = arith.constant 0 : i32
    %c0_i32_0 = arith.constant 0 : i32
    %c0_i32_1 = arith.constant 0 : i32
    return %c0_i32, %c0_i32_0 : i32, i32
  }
  func.func @transform_4(%arg0: i32) -> (i32, i32) {
    %c0_i32 = arith.constant 0 : i32
    %c0_i32_0 = arith.constant 0 : i32
    %c0_i32_1 = arith.constant 0 : i32
    return %c0_i32, %c0_i32_0 : i32, i32
  }
  func.func @transform_5(%arg0: i32) -> (i32, i32) {
    %c0_i32 = arith.constant 0 : i32
    %c0_i32_0 = arith.constant 0 : i32
    %c0_i32_1 = arith.constant 0 : i32
    return %c0_i32, %c0_i32_0 : i32, i32
  }
  func.func @transform_6(%arg0: i32) -> (i32, i32) {
    %c0_i32 = arith.constant 0 : i32
    %c0_i32_0 = arith.constant 0 : i32
    %c0_i32_1 = arith.constant 0 : i32
    return %c0_i32, %c0_i32_0 : i32, i32
  }
  func.func @transform_7(%arg0: i32) -> (i32, i32) {
    %c0_i32 = arith.constant 0 : i32
    %c0_i32_0 = arith.constant 0 : i32
    %c0_i32_1 = arith.constant 0 : i32
    return %c0_i32, %c0_i32_0 : i32, i32
  }
  func.func @transform_8(%arg0: i32) -> (i32, i32) {
    %c0_i32 = arith.constant 0 : i32
    %c0_i32_0 = arith.constant 0 : i32
    %c0_i32_1 = arith.constant 0 : i32
    return %c0_i32, %c0_i32_0 : i32, i32
  }
  func.func @transform_9(%arg0: i32) -> (i32, i32) {
    %c0_i32 = arith.constant 0 : i32
    %c0_i32_0 = arith.constant 0 : i32
    return %arg0, %c0_i32 : i32, i32
  }
  func.func @transform_10(%arg0: i32) -> (i32, i32) {
    %c0_i32 = arith.constant 0 : i32
    %c0_i32_0 = arith.constant 0 : i32
    return %arg0, %c0_i32 : i32, i32
  }
  func.func @transform_11(%arg0: i32) -> (i32, i32) {
    %c0_i32 = arith.constant 0 : i32
    %c0_i32_0 = arith.constant 0 : i32
    return %arg0, %c0_i32 : i32, i32
  }
}

</mosaic_0001>

<llo_original>
// kernel: tpu_custom_call.1
$region0: #{tpu_custom_call.1}
  #allocation0 [shape = 'u32[]', space=smem, size = 0x4, offset = 0x4, fixed_abs, tag = 'smem constant byte address 0x4 - core index']
  #allocation1 [shape = 'u32[72,128]{1,0:T(1,128)}', space=vmem, size = 0x9000, scoped, tag = 'internal scratch']
  %s0 = inlined_call_operand.hbm [shape: bf16[8,128], index: 0, kind: input, shape index: {}]
  %s1 = inlined_call_operand.hbm [shape: f32[8,128], index: 1, kind: input, shape index: {}]
  %s2 = inlined_call_operand.hbm [shape: f32[8,128], index: 2, kind: input, shape index: {}]
  %s3 = inlined_call_operand.hbm [shape: bf16[128,128], index: 3, kind: input, shape index: {}]
  %s4 = inlined_call_operand.vmem [shape: f32[1,128], index: 4, kind: input, shape index: {}]
  %s5 = inlined_call_operand.hbm [shape: bf16[128,512], index: 5, kind: input, shape index: {}]
  %s6 = inlined_call_operand.hbm [shape: bf16[128,512], index: 6, kind: input, shape index: {}]
  %s7 = inlined_call_operand.hbm [shape: bf16[128,128], index: 7, kind: input, shape index: {}]
  %s8 = inlined_call_operand.vmem [shape: f32[1,128], index: 8, kind: input, shape index: {}]
  %s9 = inlined_call_operand.hbm [shape: f32[8,128], index: 9, kind: output, shape index: {0}]
  %s10 = inlined_call_operand.hbm [shape: f32[8,128], index: 10, kind: output, shape index: {1}]
  %s11 = inlined_call_operand.hbm [shape: f32[8,128], index: 11, kind: output, shape index: {2}]
  %12 = xla_tuple %s9, %s10, %s11
  %s13 = sld [smem:[#allocation0]]
  $region90: #{tpu_custom_call.1} parent=0
    _
  %s15 = ssub.s32 1, %s13
  %s16 = scalar_select 0, %s15, %s13
  $region1: #{tpu_custom_call.1} parent=0
    #allocation2 [shape = 'u8[2048]{0}', space=vmem, size = 0x800, scoped, tag = 'input window, operand 0, single buffered']
    #allocation3 [shape = 's32[1]{0}', space=sflag, size = 0x4, scoped, tag = 'scoped memory for tpu_custom_call.1']
    #allocation4 [shape = 's32[1]{0}', space=sflag, size = 0x4, scoped, tag = 'scoped memory for tpu_custom_call.1']
    #allocation5 [shape = 'u8[4096]{0}', space=vmem, size = 0x1000, scoped, tag = 'input window, operand 1, single buffered']
    #allocation6 [shape = 's32[1]{0}', space=sflag, size = 0x4, scoped, tag = 'scoped memory for tpu_custom_call.1']
    #allocation7 [shape = 'u8[4096]{0}', space=vmem, size = 0x1000, scoped, tag = 'input window, operand 2, single buffered']
    #allocation8 [shape = 'u8[32768]{0}', space=vmem, size = 0x8000, scoped, tag = 'input window, operand 3, single buffered']
    #allocation9 [shape = 's32[1]{0}', space=sflag, size = 0x4, scoped, tag = 'scoped memory for tpu_custom_call.1']
    #allocation10 [shape = 'u8[131072]{0}', space=vmem, size = 0x20000, scoped, tag = 'input window, operand 5, single buffered']
    #allocation11 [shape = 'u8[131072]{0}', space=vmem, size = 0x20000, scoped, tag = 'input window, operand 6, single buffered']
    #allocation12 [shape = 's32[1]{0}', space=sflag, size = 0x4, scoped, tag = 'scoped memory for tpu_custom_call.1']
    #allocation13 [shape = 'u8[32768]{0}', space=vmem, size = 0x8000, scoped, tag = 'input window, operand 7, single buffered']
    #allocation14 [shape = 'u8[4096]{0}', space=vmem, size = 0x1000, scoped, tag = 'output window, operand 0, single buffered']
    #allocation15 [shape = 'u8[4096]{0}', space=vmem, size = 0x1000, scoped, tag = 'output window, operand 1, single buffered']
    #allocation16 [shape = 's32[1]{0}', space=sflag, size = 0x4, scoped, tag = 'scoped memory for tpu_custom_call.1']
    #allocation17 [shape = 'u8[4096]{0}', space=vmem, size = 0x1000, scoped, tag = 'output window, operand 2, single buffered']
    %17 = vsyncpa [#allocation3], 0
    %18 = vsyncpa [#allocation6], 0
    %19 = vsyncpa [#allocation9], 0
    %20 = vsyncpa [#allocation12], 0
    %21 = vsyncpa [#allocation4], 0
    %22 = vsyncpa [#allocation16], 0
    // Predicated region
    $region2: #{tpu_custom_call.1} parent=1 // pred_check
      _
    $region3: #{tpu_custom_call.1} parent=1 // pred_check_branch
      %24 = sbr.rel (0) target = $region5
    $region4: #{tpu_custom_call.1} parent=1 // pred_region
      %26 = vsyncadd [#allocation3], 0
      %s28 = sshll.u32 %s0, 4
      %s29 = int_to_ptr.hbm [resolvable:$true] %s28
      %s30 = sshll.u32 [#allocation2], 4
      %s31 = int_to_ptr.vmem [resolvable:$true] %s30
      %33 = dma.hbm_to_vmem [thread:$0]  %s29, 64, %s31, [#allocation3]
    $region5: #{tpu_custom_call.1} parent=1 // pred_fallthru
      _
    // Predicated region
    $region6: #{tpu_custom_call.1} parent=1 // pred_check
      _
    $region7: #{tpu_custom_call.1} parent=1 // pred_check_branch
      %35 = sbr.rel (0) target = $region9
    $region8: #{tpu_custom_call.1} parent=1 // pred_region
      %37 = vsyncadd [#allocation6], 0
      %s39 = sshll.u32 %s1, 4
      %s40 = int_to_ptr.hbm [resolvable:$true] %s39
      %s41 = sshll.u32 [#allocation5], 4
      %s42 = int_to_ptr.vmem [resolvable:$true] %s41
      %44 = dma.hbm_to_vmem [thread:$0]  %s40, 128, %s42, [#allocation6]
    $region9: #{tpu_custom_call.1} parent=1 // pred_fallthru
      _
    // Predicated region
    $region10: #{tpu_custom_call.1} parent=1 // pred_check
      _
    $region11: #{tpu_custom_call.1} parent=1 // pred_check_branch
      %46 = sbr.rel (0) target = $region13
    $region12: #{tpu_custom_call.1} parent=1 // pred_region
      %48 = vsyncadd [#allocation6], 0
      %s50 = sshll.u32 %s2, 4
      %s51 = int_to_ptr.hbm [resolvable:$true] %s50
      %s52 = sshll.u32 [#allocation7], 4
      %s53 = int_to_ptr.vmem [resolvable:$true] %s52
      %55 = dma.hbm_to_vmem [thread:$0]  %s51, 128, %s53, [#allocation6]
    $region13: #{tpu_custom_call.1} parent=1 // pred_fallthru
      _
    // Predicated region
    $region14: #{tpu_custom_call.1} parent=1 // pred_check
      _
    $region15: #{tpu_custom_call.1} parent=1 // pred_check_branch
      %57 = sbr.rel (0) target = $region17
    $region16: #{tpu_custom_call.1} parent=1 // pred_region
      %59 = vsyncadd [#allocation9], 0
      %s60 = sshll.u32 %s3, 4
      %s61 = int_to_ptr.hbm [resolvable:$true] %s60
      %s62 = sshll.u32 [#allocation8], 4
      %s63 = int_to_ptr.vmem [resolvable:$true] %s62
      %68 = dma.hbm_to_vmem [thread:$0]  %s61, 1024, %s63, [#allocation9], 64, 64, 4
    $region17: #{tpu_custom_call.1} parent=1 // pred_fallthru
      _
    // Predicated region
    $region18: #{tpu_custom_call.1} parent=1 // pred_check
      _
    $region19: #{tpu_custom_call.1} parent=1 // pred_check_branch
      %70 = sbr.rel (0) target = $region21
    $region20: #{tpu_custom_call.1} parent=1 // pred_region
      _
    $region21: #{tpu_custom_call.1} parent=1 // pred_fallthru
      _
    // Predicated region
    $region22: #{tpu_custom_call.1} parent=1 // pred_check
      _
    $region23: #{tpu_custom_call.1} parent=1 // pred_check_branch
      %72 = sbr.rel (0) target = $region25
    $region24: #{tpu_custom_call.1} parent=1 // pred_region
      %74 = vsyncadd [#allocation9], 0
      %s75 = sshll.u32 %s5, 4
      %s76 = int_to_ptr.hbm [resolvable:$true] %s75
      %s77 = sshll.u32 [#allocation10], 4
      %s78 = int_to_ptr.vmem [resolvable:$true] %s77
      %83 = dma.hbm_to_vmem [thread:$0]  %s76, 4096, %s78, [#allocation9], 256, 256, 16
    $region25: #{tpu_custom_call.1} parent=1 // pred_fallthru
      _
    // Predicated region
    $region26: #{tpu_custom_call.1} parent=1 // pred_check
      _
    $region27: #{tpu_custom_call.1} parent=1 // pred_check_branch
      %85 = sbr.rel (0) target = $region29
    $region28: #{tpu_custom_call.1} parent=1 // pred_region
      %87 = vsyncadd [#allocation12], 0
      %s88 = sshll.u32 %s6, 4
      %s89 = int_to_ptr.hbm [resolvable:$true] %s88
      %s90 = sshll.u32 [#allocation11], 4
      %s91 = int_to_ptr.vmem [resolvable:$true] %s90
      %96 = dma.hbm_to_vmem [thread:$0]  %s89, 4096, %s91, [#allocation12], 256, 256, 16
    $region29: #{tpu_custom_call.1} parent=1 // pred_fallthru
      _
    // Predicated region
    $region30: #{tpu_custom_call.1} parent=1 // pred_check
      _
    $region31: #{tpu_custom_call.1} parent=1 // pred_check_branch
      %98 = sbr.rel (0) target = $region33
    $region32: #{tpu_custom_call.1} parent=1 // pred_region
      %100 = vsyncadd [#allocation12], 0
      %s101 = sshll.u32 %s7, 4
      %s102 = int_to_ptr.hbm [resolvable:$true] %s101
      %s103 = sshll.u32 [#allocation13], 4
      %s104 = int_to_ptr.vmem [resolvable:$true] %s103
      %109 = dma.hbm_to_vmem [thread:$0]  %s102, 1024, %s104, [#allocation12], 64, 64, 4
    $region33: #{tpu_custom_call.1} parent=1 // pred_fallthru
      _
    // Predicated region
    $region34: #{tpu_custom_call.1} parent=1 // pred_check
      _
    $region35: #{tpu_custom_call.1} parent=1 // pred_check_branch
      %111 = sbr.rel (0) target = $region37
    $region36: #{tpu_custom_call.1} parent=1 // pred_region
      _
    $region37: #{tpu_custom_call.1} parent=1 // pred_fallthru
      _
    // Predicated region
    $region38: #{tpu_custom_call.1} parent=1 // pred_check
      _
    $region39: #{tpu_custom_call.1} parent=1 // pred_check_branch
      %113 = sbr.rel (0) target = $region41
    $region40: #{tpu_custom_call.1} parent=1 // pred_region
      %115 = dma.done [#allocation3], 64
    $region41: #{tpu_custom_call.1} parent=1 // pred_fallthru
      _
    // Predicated region
    $region42: #{tpu_custom_call.1} parent=1 // pred_check
      _
    $region43: #{tpu_custom_call.1} parent=1 // pred_check_branch
      %117 = sbr.rel (0) target = $region45
    $region44: #{tpu_custom_call.1} parent=1 // pred_region
      %119 = dma.done [#allocation6], 128
    $region45: #{tpu_custom_call.1} parent=1 // pred_fallthru
      _
    // Predicated region
    $region46: #{tpu_custom_call.1} parent=1 // pred_check
      _
    $region47: #{tpu_custom_call.1} parent=1 // pred_check_branch
      %121 = sbr.rel (0) target = $region49
    $region48: #{tpu_custom_call.1} parent=1 // pred_region
      %123 = dma.done [#allocation6], 128
    $region49: #{tpu_custom_call.1} parent=1 // pred_fallthru
      _
    // Predicated region
    $region50: #{tpu_custom_call.1} parent=1 // pred_check
      _
    $region51: #{tpu_custom_call.1} parent=1 // pred_check_branch
      %125 = sbr.rel (0) target = $region53
    $region52: #{tpu_custom_call.1} parent=1 // pred_region
      %127 = dma.done [#allocation9], 1024
    $region53: #{tpu_custom_call.1} parent=1 // pred_fallthru
      _
    // Predicated region
    $region54: #{tpu_custom_call.1} parent=1 // pred_check
      _
    $region55: #{tpu_custom_call.1} parent=1 // pred_check_branch
      %129 = sbr.rel (0) target = $region57
    $region56: #{tpu_custom_call.1} parent=1 // pred_region
      %131 = dma.done [#allocation9], 4096
    $region57: #{tpu_custom_call.1} parent=1 // pred_fallthru
      _
    // Predicated region
    $region58: #{tpu_custom_call.1} parent=1 // pred_check
      _
    $region59: #{tpu_custom_call.1} parent=1 // pred_check_branch
      %133 = sbr.rel (0) target = $region61
    $region60: #{tpu_custom_call.1} parent=1 // pred_region
      %135 = dma.done [#allocation12], 4096
    $region61: #{tpu_custom_call.1} parent=1 // pred_fallthru
      _
    // Predicated region
    $region62: #{tpu_custom_call.1} parent=1 // pred_check
      _
    $region63: #{tpu_custom_call.1} parent=1 // pred_check_branch
      %137 = sbr.rel (0) target = $region65
    $region64: #{tpu_custom_call.1} parent=1 // pred_region
      %139 = dma.done [#allocation12], 1024
    $region65: #{tpu_custom_call.1} parent=1 // pred_fallthru
      _
    %v140 = vld [vmem:[#allocation2] sm:$0xf]
    %v141 = vld [vmem:[#allocation5] sm:$0xff]
    %v142 = vld [vmem:[#allocation7] sm:$0xff]
    %v143 = vld [vmem:[#allocation8] sm:$0xf]
    %v144 = vld [vmem:[#allocation8 + $0x4] sm:$0xf]
    %v145 = vld [vmem:[#allocation8 + $0x8] sm:$0xf]
    %v146 = vld [vmem:[#allocation8 + $0xc] sm:$0xf]
    %v147 = vld [vmem:[#allocation8 + $0x10] sm:$0xf]
    %v148 = vld [vmem:[#allocation8 + $0x14] sm:$0xf]
    %v149 = vld [vmem:[#allocation8 + $0x18] sm:$0xf]
    %v150 = vld [vmem:[#allocation8 + $0x1c] sm:$0xf]
    %v151 = vld [vmem:[#allocation8 + $0x20] sm:$0xf]
    %v152 = vld [vmem:[#allocation8 + $0x24] sm:$0xf]
    %v153 = vld [vmem:[#allocation8 + $0x28] sm:$0xf]
    %v154 = vld [vmem:[#allocation8 + $0x2c] sm:$0xf]
    %v155 = vld [vmem:[#allocation8 + $0x30] sm:$0xf]
    %v156 = vld [vmem:[#allocation8 + $0x34] sm:$0xf]
    %v157 = vld [vmem:[#allocation8 + $0x38] sm:$0xf]
    %v158 = vld [vmem:[#allocation8 + $0x3c] sm:$0xf]
    %v159 = vld [vmem:[%s4] sm:$0x1]
    %v161 = vperm.slane %v159, 0
    %v179 = vunpack.c.l.b16 %v143
    %v180 = vunpack.c.l.b16 %v144
    %v181 = vunpack.c.l.b16 %v145
    %v182 = vunpack.c.l.b16 %v146
    %v183 = vunpack.c.l.b16 %v147
    %v184 = vunpack.c.l.b16 %v148
    %v185 = vunpack.c.l.b16 %v149
    %v186 = vunpack.c.l.b16 %v150
    %v187 = vunpack.c.l.b16 %v151
    %v188 = vunpack.c.l.b16 %v152
    %v189 = vunpack.c.l.b16 %v153
    %v190 = vunpack.c.l.b16 %v154
    %v191 = vunpack.c.l.b16 %v155
    %v192 = vunpack.c.l.b16 %v156
    %v193 = vunpack.c.l.b16 %v157
    %v194 = vunpack.c.l.b16 %v158
    %v195 = vpack.c.b16 %v180, %v179
    %v196 = vpack.c.b16 %v182, %v181
    %v197 = vpack.c.b16 %v184, %v183
    %v198 = vpack.c.b16 %v186, %v185
    %v199 = vpack.c.b16 %v188, %v187
    %v200 = vpack.c.b16 %v190, %v189
    %v201 = vpack.c.b16 %v192, %v191
    %v202 = vpack.c.b16 %v194, %v193
    %211 = vmatpush.bf16.msra.mxu0 %v202
    %212 = vmatpush.bf16.msra.mxu0 %v201
    %213 = vmatpush.bf16.msra.mxu0 %v200
    %214 = vmatpush.bf16.msra.mxu0 %v199
    %215 = vmatpush.bf16.msra.mxu0 %v198
    %216 = vmatpush.bf16.msra.mxu0 %v197
    %217 = vmatpush.bf16.msra.mxu0 %v196
    %218 = vmatpush.bf16.msra.mxu0 %v195
    %219 = vmatmul.bf16.gmra.mxu0 %v140
    %v220 = vpop.f32.mrf.mxu0
    %v221 = vadd.f32 %v161, %v220
    %v222 = vpop.f32.mrf.mxu0
    %223 = vdwg.mxu0
    %v224 = vmul.f32 %v221, 0.1
    %v225 = vmax.f32 %v221, %v224
    %v226 = vpack.c.bf16 %v225, %v225
    %v227 = vld [vmem:[#allocation10] sm:$0xff]
    %v228 = vld [vmem:[#allocation10 + $0x8] sm:$0xff]
    %v229 = vld [vmem:[#allocation10 + $0x10] sm:$0xff]
    %v230 = vld [vmem:[#allocation10 + $0x18] sm:$0xff]
    %v231 = vld [vmem:[#allocation10 + $0x20] sm:$0xff]
    %v232 = vld [vmem:[#allocation10 + $0x28] sm:$0xff]
    %v233 = vld [vmem:[#allocation10 + $0x30] sm:$0xff]
    %v234 = vld [vmem:[#allocation10 + $0x38] sm:$0xff]
    %v235 = vld [vmem:[#allocation10 + $0x40] sm:$0xff]
    %v236 = vld [vmem:[#allocation10 + $0x48] sm:$0xff]
    %v237 = vld [vmem:[#allocation10 + $0x50] sm:$0xff]
    %v238 = vld [vmem:[#allocation10 + $0x58] sm:$0xff]
    %v239 = vld [vmem:[#allocation10 + $0x60] sm:$0xff]
    %v240 = vld [vmem:[#allocation10 + $0x68] sm:$0xff]
    %v241 = vld [vmem:[#allocation10 + $0x70] sm:$0xff]
    %v242 = vld [vmem:[#allocation10 + $0x78] sm:$0xff]
    %v243 = vld [vmem:[#allocation10 + $0x80] sm:$0xff]
    %v244 = vld [vmem:[#allocation10 + $0x88] sm:$0xff]
    %v245 = vld [vmem:[#allocation10 + $0x90] sm:$0xff]
    %v246 = vld [vmem:[#allocation10 + $0x98] sm:$0xff]
    %v247 = vld [vmem:[#allocation10 + $0xa0] sm:$0xff]
    %v248 = vld [vmem:[#allocation10 + $0xa8] sm:$0xff]
    %v249 = vld [vmem:[#allocation10 + $0xb0] sm:$0xff]
    %v250 = vld [vmem:[#allocation10 + $0xb8] sm:$0xff]
    %v251 = vld [vmem:[#allocation10 + $0xc0] sm:$0xff]
    %v252 = vld [vmem:[#allocation10 + $0xc8] sm:$0xff]
    %v253 = vld [vmem:[#allocation10 + $0xd0] sm:$0xff]
    %v254 = vld [vmem:[#allocation10 + $0xd8] sm:$0xff]
    %v255 = vld [vmem:[#allocation10 + $0xe0] sm:$0xff]
    %v256 = vld [vmem:[#allocation10 + $0xe8] sm:$0xff]
    %v257 = vld [vmem:[#allocation10 + $0xf0] sm:$0xff]
    %v258 = vld [vmem:[#allocation10 + $0xf8] sm:$0xff]
    %v259 = vpack.c.bf16 %v141, %v141
    %v260 = vld [vmem:[#allocation11] sm:$0xff]
    %v261 = vld [vmem:[#allocation11 + $0x8] sm:$0xff]
    %v262 = vld [vmem:[#allocation11 + $0x10] sm:$0xff]
    %v263 = vld [vmem:[#allocation11 + $0x18] sm:$0xff]
    %v264 = vld [vmem:[#allocation11 + $0x20] sm:$0xff]
    %v265 = vld [vmem:[#allocation11 + $0x28] sm:$0xff]
    %v266 = vld [vmem:[#allocation11 + $0x30] sm:$0xff]
    %v267 = vld [vmem:[#allocation11 + $0x38] sm:$0xff]
    %v268 = vld [vmem:[#allocation11 + $0x40] sm:$0xff]
    %v269 = vld [vmem:[#allocation11 + $0x48] sm:$0xff]
    %v270 = vld [vmem:[#allocation11 + $0x50] sm:$0xff]
    %v271 = vld [vmem:[#allocation11 + $0x58] sm:$0xff]
    %v272 = vld [vmem:[#allocation11 + $0x60] sm:$0xff]
    %v273 = vld [vmem:[#allocation11 + $0x68] sm:$0xff]
    %v274 = vld [vmem:[#allocation11 + $0x70] sm:$0xff]
    %v275 = vld [vmem:[#allocation11 + $0x78] sm:$0xff]
    %v276 = vld [vmem:[#allocation11 + $0x80] sm:$0xff]
    %v277 = vld [vmem:[#allocation11 + $0x88] sm:$0xff]
    %v278 = vld [vmem:[#allocation11 + $0x90] sm:$0xff]
    %v279 = vld [vmem:[#allocation11 + $0x98] sm:$0xff]
    %v280 = vld [vmem:[#allocation11 + $0xa0] sm:$0xff]
    %v281 = vld [vmem:[#allocation11 + $0xa8] sm:$0xff]
    %v282 = vld [vmem:[#allocation11 + $0xb0] sm:$0xff]
    %v283 = vld [vmem:[#allocation11 + $0xb8] sm:$0xff]
    %v284 = vld [vmem:[#allocation11 + $0xc0] sm:$0xff]
    %v285 = vld [vmem:[#allocation11 + $0xc8] sm:$0xff]
    %v286 = vld [vmem:[#allocation11 + $0xd0] sm:$0xff]
    %v287 = vld [vmem:[#allocation11 + $0xd8] sm:$0xff]
    %v288 = vld [vmem:[#allocation11 + $0xe0] sm:$0xff]
    %v289 = vld [vmem:[#allocation11 + $0xe8] sm:$0xff]
    %v290 = vld [vmem:[#allocation11 + $0xf0] sm:$0xff]
    %v291 = vld [vmem:[#allocation11 + $0xf8] sm:$0xff]
    %v324 = vunpack.c.l.b16 %v260
    %v325 = vunpack.c.h.b16 %v260
    %v326 = vunpack.c.l.b16 %v261
    %v327 = vunpack.c.h.b16 %v261
    %v328 = vunpack.c.l.b16 %v262
    %v329 = vunpack.c.h.b16 %v262
    %v330 = vunpack.c.l.b16 %v263
    %v331 = vunpack.c.h.b16 %v263
    %v332 = vunpack.c.l.b16 %v264
    %v333 = vunpack.c.h.b16 %v264
    %v334 = vunpack.c.l.b16 %v265
    %v335 = vunpack.c.h.b16 %v265
    %v336 = vunpack.c.l.b16 %v266
    %v337 = vunpack.c.h.b16 %v266
    %v338 = vunpack.c.l.b16 %v267
    %v339 = vunpack.c.h.b16 %v267
    %v340 = vunpack.c.l.b16 %v268
    %v341 = vunpack.c.h.b16 %v268
    %v342 = vunpack.c.l.b16 %v269
    %v343 = vunpack.c.h.b16 %v269
    %v344 = vunpack.c.l.b16 %v270
    %v345 = vunpack.c.h.b16 %v270
    %v346 = vunpack.c.l.b16 %v271
    %v347 = vunpack.c.h.b16 %v271
    %v348 = vunpack.c.l.b16 %v272
    %v349 = vunpack.c.h.b16 %v272
    %v350 = vunpack.c.l.b16 %v273
    %v351 = vunpack.c.h.b16 %v273
    %v352 = vunpack.c.l.b16 %v274
    %v353 = vunpack.c.h.b16 %v274
    %v354 = vunpack.c.l.b16 %v275
    %v355 = vunpack.c.h.b16 %v275
    %v356 = vunpack.c.l.b16 %v276
    %v357 = vunpack.c.h.b16 %v276
    %v358 = vunpack.c.l.b16 %v277
    %v359 = vunpack.c.h.b16 %v277
    %v360 = vunpack.c.l.b16 %v278
    %v361 = vunpack.c.h.b16 %v278
    %v362 = vunpack.c.l.b16 %v279
    %v363 = vunpack.c.h.b16 %v279
    %v364 = vunpack.c.l.b16 %v280
    %v365 = vunpack.c.h.b16 %v280
    %v366 = vunpack.c.l.b16 %v281
    %v367 = vunpack.c.h.b16 %v281
    %v368 = vunpack.c.l.b16 %v282
    %v369 = vunpack.c.h.b16 %v282
    %v370 = vunpack.c.l.b16 %v283
    %v371 = vunpack.c.h.b16 %v283
    %v372 = vunpack.c.l.b16 %v284
    %v373 = vunpack.c.h.b16 %v284
    %v374 = vunpack.c.l.b16 %v285
    %v375 = vunpack.c.h.b16 %v285
    %v376 = vunpack.c.l.b16 %v286
    %v377 = vunpack.c.h.b16 %v286
    %v378 = vunpack.c.l.b16 %v287
    %v379 = vunpack.c.h.b16 %v287
    %v380 = vunpack.c.l.b16 %v288
    %v381 = vunpack.c.h.b16 %v288
    %v382 = vunpack.c.l.b16 %v289
    %v383 = vunpack.c.h.b16 %v289
    %v384 = vunpack.c.l.b16 %v290
    %v385 = vunpack.c.h.b16 %v290
    %v386 = vunpack.c.l.b16 %v291
    %v387 = vunpack.c.h.b16 %v291
    %v388 = vpack.c.b16 %v328, %v324
    %v389 = vpack.c.b16 %v329, %v325
    %v390 = vpack.c.b16 %v330, %v326
    %v391 = vpack.c.b16 %v331, %v327
    %v392 = vpack.c.b16 %v336, %v332
    %v393 = vpack.c.b16 %v337, %v333
    %v394 = vpack.c.b16 %v338, %v334
    %v395 = vpack.c.b16 %v339, %v335
    %v396 = vpack.c.b16 %v344, %v340
    %v397 = vpack.c.b16 %v345, %v341
    %v398 = vpack.c.b16 %v346, %v342
    %v399 = vpack.c.b16 %v347, %v343
    %v400 = vpack.c.b16 %v352, %v348
    %v401 = vpack.c.b16 %v353, %v349
    %v402 = vpack.c.b16 %v354, %v350
    %v403 = vpack.c.b16 %v355, %v351
    %v404 = vpack.c.b16 %v360, %v356
    %v405 = vpack.c.b16 %v361, %v357
    %v406 = vpack.c.b16 %v362, %v358
    %v407 = vpack.c.b16 %v363, %v359
    %v408 = vpack.c.b16 %v368, %v364
    %v409 = vpack.c.b16 %v369, %v365
    %v410 = vpack.c.b16 %v370, %v366
    %v411 = vpack.c.b16 %v371, %v367
    %v412 = vpack.c.b16 %v376, %v372
    %v413 = vpack.c.b16 %v377, %v373
    %v414 = vpack.c.b16 %v378, %v374
    %v415 = vpack.c.b16 %v379, %v375
    %v416 = vpack.c.b16 %v384, %v380
    %v417 = vpack.c.b16 %v385, %v381
    %v418 = vpack.c.b16 %v386, %v382
    %v419 = vpack.c.b16 %v387, %v383
    %452 = vmatpush.bf16.msra.mxu0 %v416
    %453 = vmatpush.bf16.msra.mxu0 %v412
    %454 = vmatpush.bf16.msra.mxu0 %v408
    %455 = vmatpush.bf16.msra.mxu0 %v404
    %456 = vmatpush.bf16.msra.mxu0 %v400
    %457 = vmatpush.bf16.msra.mxu0 %v396
    %458 = vmatpush.bf16.msra.mxu0 %v392
    %459 = vmatpush.bf16.msra.mxu0 %v388
    %460 = vmatmul.bf16.gmra.mxu0 %v259
    %v461 = vpop.f32.mrf.mxu0
    %v462 = vadd.f32 0.0, %v461
    %v463 = vpop.f32.mrf.mxu0
    %464 = vdwg.mxu0
    %465 = vmatpush.bf16.msra.mxu0 %v417
    %466 = vmatpush.bf16.msra.mxu0 %v413
    %467 = vmatpush.bf16.msra.mxu0 %v409
    %468 = vmatpush.bf16.msra.mxu0 %v405
    %469 = vmatpush.bf16.msra.mxu0 %v401
    %470 = vmatpush.bf16.msra.mxu0 %v397
    %471 = vmatpush.bf16.msra.mxu0 %v393
    %472 = vmatpush.bf16.msra.mxu0 %v389
    %473 = vmatmul.bf16.gmra.mxu0 %v259
    %v474 = vpop.f32.mrf.mxu0
    %v475 = vadd.f32 0.0, %v474
    %v476 = vpop.f32.mrf.mxu0
    %477 = vdwg.mxu0
    %478 = vmatpush.bf16.msra.mxu0 %v418
    %479 = vmatpush.bf16.msra.mxu0 %v414
    %480 = vmatpush.bf16.msra.mxu0 %v410
    %481 = vmatpush.bf16.msra.mxu0 %v406
    %482 = vmatpush.bf16.msra.mxu0 %v402
    %483 = vmatpush.bf16.msra.mxu0 %v398
    %484 = vmatpush.bf16.msra.mxu0 %v394
    %485 = vmatpush.bf16.msra.mxu0 %v390
    %486 = vmatmul.bf16.gmra.mxu0 %v259
    %v487 = vpop.f32.mrf.mxu0
    %v488 = vadd.f32 0.0, %v487
    %v489 = vpop.f32.mrf.mxu0
    %490 = vdwg.mxu0
    %491 = vmatpush.bf16.msra.mxu0 %v419
    %492 = vmatpush.bf16.msra.mxu0 %v415
    %493 = vmatpush.bf16.msra.mxu0 %v411
    %494 = vmatpush.bf16.msra.mxu0 %v407
    %495 = vmatpush.bf16.msra.mxu0 %v403
    %496 = vmatpush.bf16.msra.mxu0 %v399
    %497 = vmatpush.bf16.msra.mxu0 %v395
    %498 = vmatpush.bf16.msra.mxu0 %v391
    %499 = vmatmul.bf16.gmra.mxu0 %v259
    %v500 = vpop.f32.mrf.mxu0
    %v501 = vadd.f32 0.0, %v500
    %v502 = vpop.f32.mrf.mxu0
    %503 = vdwg.mxu0
    %v536 = vunpack.c.l.b16 %v227
    %v537 = vunpack.c.h.b16 %v227
    %v538 = vunpack.c.l.b16 %v228
    %v539 = vunpack.c.h.b16 %v228
    %v540 = vunpack.c.l.b16 %v229
    %v541 = vunpack.c.h.b16 %v229
    %v542 = vunpack.c.l.b16 %v230
    %v543 = vunpack.c.h.b16 %v230
    %v544 = vunpack.c.l.b16 %v231
    %v545 = vunpack.c.h.b16 %v231
    %v546 = vunpack.c.l.b16 %v232
    %v547 = vunpack.c.h.b16 %v232
    %v548 = vunpack.c.l.b16 %v233
    %v549 = vunpack.c.h.b16 %v233
    %v550 = vunpack.c.l.b16 %v234
    %v551 = vunpack.c.h.b16 %v234
    %v552 = vunpack.c.l.b16 %v235
    %v553 = vunpack.c.h.b16 %v235
    %v554 = vunpack.c.l.b16 %v236
    %v555 = vunpack.c.h.b16 %v236
    %v556 = vunpack.c.l.b16 %v237
    %v557 = vunpack.c.h.b16 %v237
    %v558 = vunpack.c.l.b16 %v238
    %v559 = vunpack.c.h.b16 %v238
    %v560 = vunpack.c.l.b16 %v239
    %v561 = vunpack.c.h.b16 %v239
    %v562 = vunpack.c.l.b16 %v240
    %v563 = vunpack.c.h.b16 %v240
    %v564 = vunpack.c.l.b16 %v241
    %v565 = vunpack.c.h.b16 %v241
    %v566 = vunpack.c.l.b16 %v242
    %v567 = vunpack.c.h.b16 %v242
    %v568 = vunpack.c.l.b16 %v243
    %v569 = vunpack.c.h.b16 %v243
    %v570 = vunpack.c.l.b16 %v244
    %v571 = vunpack.c.h.b16 %v244
    %v572 = vunpack.c.l.b16 %v245
    %v573 = vunpack.c.h.b16 %v245
    %v574 = vunpack.c.l.b16 %v246
    %v575 = vunpack.c.h.b16 %v246
    %v576 = vunpack.c.l.b16 %v247
    %v577 = vunpack.c.h.b16 %v247
    %v578 = vunpack.c.l.b16 %v248
    %v579 = vunpack.c.h.b16 %v248
    %v580 = vunpack.c.l.b16 %v249
    %v581 = vunpack.c.h.b16 %v249
    %v582 = vunpack.c.l.b16 %v250
    %v583 = vunpack.c.h.b16 %v250
    %v584 = vunpack.c.l.b16 %v251
    %v585 = vunpack.c.h.b16 %v251
    %v586 = vunpack.c.l.b16 %v252
    %v587 = vunpack.c.h.b16 %v252
    %v588 = vunpack.c.l.b16 %v253
    %v589 = vunpack.c.h.b16 %v253
    %v590 = vunpack.c.l.b16 %v254
    %v591 = vunpack.c.h.b16 %v254
    %v592 = vunpack.c.l.b16 %v255
    %v593 = vunpack.c.h.b16 %v255
    %v594 = vunpack.c.l.b16 %v256
    %v595 = vunpack.c.h.b16 %v256
    %v596 = vunpack.c.l.b16 %v257
    %v597 = vunpack.c.h.b16 %v257
    %v598 = vunpack.c.l.b16 %v258
    %v599 = vunpack.c.h.b16 %v258
    %v600 = vpack.c.b16 %v540, %v536
    %v601 = vpack.c.b16 %v541, %v537
    %v602 = vpack.c.b16 %v542, %v538
    %v603 = vpack.c.b16 %v543, %v539
    %v604 = vpack.c.b16 %v548, %v544
    %v605 = vpack.c.b16 %v549, %v545
    %v606 = vpack.c.b16 %v550, %v546
    %v607 = vpack.c.b16 %v551, %v547
    %v608 = vpack.c.b16 %v556, %v552
    %v609 = vpack.c.b16 %v557, %v553
    %v610 = vpack.c.b16 %v558, %v554
    %v611 = vpack.c.b16 %v559, %v555
    %v612 = vpack.c.b16 %v564, %v560
    %v613 = vpack.c.b16 %v565, %v561
    %v614 = vpack.c.b16 %v566, %v562
    %v615 = vpack.c.b16 %v567, %v563
    %v616 = vpack.c.b16 %v572, %v568
    %v617 = vpack.c.b16 %v573, %v569
    %v618 = vpack.c.b16 %v574, %v570
    %v619 = vpack.c.b16 %v575, %v571
    %v620 = vpack.c.b16 %v580, %v576
    %v621 = vpack.c.b16 %v581, %v577
    %v622 = vpack.c.b16 %v582, %v578
    %v623 = vpack.c.b16 %v583, %v579
    %v624 = vpack.c.b16 %v588, %v584
    %v625 = vpack.c.b16 %v589, %v585
    %v626 = vpack.c.b16 %v590, %v586
    %v627 = vpack.c.b16 %v591, %v587
    %v628 = vpack.c.b16 %v596, %v592
    %v629 = vpack.c.b16 %v597, %v593
    %v630 = vpack.c.b16 %v598, %v594
    %v631 = vpack.c.b16 %v599, %v595
    %664 = vmatpush.bf16.msra.mxu0 %v628
    %665 = vmatpush.bf16.msra.mxu0 %v624
    %666 = vmatpush.bf16.msra.mxu0 %v620
    %667 = vmatpush.bf16.msra.mxu0 %v616
    %668 = vmatpush.bf16.msra.mxu0 %v612
    %669 = vmatpush.bf16.msra.mxu0 %v608
    %670 = vmatpush.bf16.msra.mxu0 %v604
    %671 = vmatpush.bf16.msra.mxu0 %v600
    %672 = vmatmul.bf16.gmra.mxu0 %v226
    %v673 = vpop.f32.mrf.mxu0
    %v674 = vadd.f32 %v462, %v673
    %v675 = vpop.f32.mrf.mxu0
    %676 = vdwg.mxu0
    %677 = vmatpush.bf16.msra.mxu0 %v629
    %678 = vmatpush.bf16.msra.mxu0 %v625
    %679 = vmatpush.bf16.msra.mxu0 %v621
    %680 = vmatpush.bf16.msra.mxu0 %v617
    %681 = vmatpush.bf16.msra.mxu0 %v613
    %682 = vmatpush.bf16.msra.mxu0 %v609
    %683 = vmatpush.bf16.msra.mxu0 %v605
    %684 = vmatpush.bf16.msra.mxu0 %v601
    %685 = vmatmul.bf16.gmra.mxu0 %v226
    %v686 = vpop.f32.mrf.mxu0
    %v687 = vadd.f32 %v475, %v686
    %v688 = vpop.f32.mrf.mxu0
    %689 = vdwg.mxu0
    %690 = vmatpush.bf16.msra.mxu0 %v630
    %691 = vmatpush.bf16.msra.mxu0 %v626
    %692 = vmatpush.bf16.msra.mxu0 %v622
    %693 = vmatpush.bf16.msra.mxu0 %v618
    %694 = vmatpush.bf16.msra.mxu0 %v614
    %695 = vmatpush.bf16.msra.mxu0 %v610
    %696 = vmatpush.bf16.msra.mxu0 %v606
    %697 = vmatpush.bf16.msra.mxu0 %v602
    %698 = vmatmul.bf16.gmra.mxu0 %v226
    %v699 = vpop.f32.mrf.mxu0
    %v700 = vadd.f32 %v488, %v699
    %v701 = vpop.f32.mrf.mxu0
    %702 = vdwg.mxu0
    %703 = vmatpush.bf16.msra.mxu0 %v631
    %704 = vmatpush.bf16.msra.mxu0 %v627
    %705 = vmatpush.bf16.msra.mxu0 %v623
    %706 = vmatpush.bf16.msra.mxu0 %v619
    %707 = vmatpush.bf16.msra.mxu0 %v615
    %708 = vmatpush.bf16.msra.mxu0 %v611
    %709 = vmatpush.bf16.msra.mxu0 %v607
    %710 = vmatpush.bf16.msra.mxu0 %v603
    %711 = vmatmul.bf16.gmra.mxu0 %v226
    %v712 = vpop.f32.mrf.mxu0
    %v713 = vadd.f32 %v501, %v712
    %v714 = vpop.f32.mrf.mxu0
    %715 = vdwg.mxu0
    %v716 = vxor.u32 %v674, 2147483648
    %v717 = vxor.u32 %v687, 2147483648
    %v718 = vxor.u32 %v700, 2147483648
    %v719 = vmul.f32 %v716, 1.442695
    %v720 = vpow.pop %v719
    %v721 = vmul.f32 %v717, 1.442695
    %v722 = vpow.pop %v721
    %v723 = vmul.f32 %v718, 1.442695
    %v724 = vpow.pop %v723
    %v725 = vadd.f32 %v720, 1.0
    %v726 = vadd.f32 %v722, 1.0
    %v727 = vadd.f32 %v724, 1.0
    %v728 = vrcp.pop %v725
    %v729 = vmul.f32 %v725, %v728
    %v730 = vsub.f32 1.0, %v729
    %v731 = vmul.f32 %v728, %v730
    %v732 = vadd.f32 %v728, %v731
    %vm733 = vweird.f32 %v725
    %vm734 = vweird.f32 %v728
    %vm735 = vmor %vm733, %vm734
    %v736 = vsel %vm735, %v728, %v732
    %v737 = vand.u32 2147483647, %v725
    %vm738 = vcmp.eq.f32.partialorder %v737, 8.507059e+37
    %v739 = vand.u32 %v725, 2147483648
    %v740 = vor.u32 1.1754944e-38, %v739
    %v741 = vsel %vm738, %v740, %v736
    %v742 = vmul.f32 1.0, %v741
    %v743 = vrcp.pop %v726
    %v744 = vmul.f32 %v726, %v743
    %v745 = vsub.f32 1.0, %v744
    %v746 = vmul.f32 %v743, %v745
    %v747 = vadd.f32 %v743, %v746
    %vm748 = vweird.f32 %v726
    %vm749 = vweird.f32 %v743
    %vm750 = vmor %vm748, %vm749
    %v751 = vsel %vm750, %v743, %v747
    %v752 = vand.u32 2147483647, %v726
    %vm753 = vcmp.eq.f32.partialorder %v752, 8.507059e+37
    %v754 = vand.u32 %v726, 2147483648
    %v755 = vor.u32 1.1754944e-38, %v754
    %v756 = vsel %vm753, %v755, %v751
    %v757 = vmul.f32 1.0, %v756
    %v758 = vrcp.pop %v727
    %v759 = vmul.f32 %v727, %v758
    %v760 = vsub.f32 1.0, %v759
    %v761 = vmul.f32 %v758, %v760
    %v762 = vadd.f32 %v758, %v761
    %vm763 = vweird.f32 %v727
    %vm764 = vweird.f32 %v758
    %vm765 = vmor %vm763, %vm764
    %v766 = vsel %vm765, %v758, %v762
    %v767 = vand.u32 2147483647, %v727
    %vm768 = vcmp.eq.f32.partialorder %v767, 8.507059e+37
    %v769 = vand.u32 %v727, 2147483648
    %v770 = vor.u32 1.1754944e-38, %v769
    %v771 = vsel %vm768, %v770, %v766
    %v772 = vmul.f32 1.0, %v771
    %v773 = vtanh.pop %v713
    %v774 = vmul.f32 %v757, %v142
    %v775 = vmul.f32 %v742, %v773
    %v776 = vadd.f32 %v774, %v775
    %v777 = vtanh.pop %v776
    %v778 = vmul.f32 %v772, %v777
    %v779 = vpack.c.bf16 %v778, %v778
    %v780 = vld [vmem:[#allocation13] sm:$0xf]
    %v781 = vld [vmem:[#allocation13 + $0x4] sm:$0xf]
    %v782 = vld [vmem:[#allocation13 + $0x8] sm:$0xf]
    %v783 = vld [vmem:[#allocation13 + $0xc] sm:$0xf]
    %v784 = vld [vmem:[#allocation13 + $0x10] sm:$0xf]
    %v785 = vld [vmem:[#allocation13 + $0x14] sm:$0xf]
    %v786 = vld [vmem:[#allocation13 + $0x18] sm:$0xf]
    %v787 = vld [vmem:[#allocation13 + $0x1c] sm:$0xf]
    %v788 = vld [vmem:[#allocation13 + $0x20] sm:$0xf]
    %v789 = vld [vmem:[#allocation13 + $0x24] sm:$0xf]
    %v790 = vld [vmem:[#allocation13 + $0x28] sm:$0xf]
    %v791 = vld [vmem:[#allocation13 + $0x2c] sm:$0xf]
    %v792 = vld [vmem:[#allocation13 + $0x30] sm:$0xf]
    %v793 = vld [vmem:[#allocation13 + $0x34] sm:$0xf]
    %v794 = vld [vmem:[#allocation13 + $0x38] sm:$0xf]
    %v795 = vld [vmem:[#allocation13 + $0x3c] sm:$0xf]
    %v796 = vld [vmem:[%s8] sm:$0x1]
    %v798 = vperm.slane %v796, 0
    %v816 = vunpack.c.l.b16 %v780
    %v817 = vunpack.c.l.b16 %v781
    %v818 = vunpack.c.l.b16 %v782
    %v819 = vunpack.c.l.b16 %v783
    %v820 = vunpack.c.l.b16 %v784
    %v821 = vunpack.c.l.b16 %v785
    %v822 = vunpack.c.l.b16 %v786
    %v823 = vunpack.c.l.b16 %v787
    %v824 = vunpack.c.l.b16 %v788
    %v825 = vunpack.c.l.b16 %v789
    %v826 = vunpack.c.l.b16 %v790
    %v827 = vunpack.c.l.b16 %v791
    %v828 = vunpack.c.l.b16 %v792
    %v829 = vunpack.c.l.b16 %v793
    %v830 = vunpack.c.l.b16 %v794
    %v831 = vunpack.c.l.b16 %v795
    %v832 = vpack.c.b16 %v817, %v816
    %v833 = vpack.c.b16 %v819, %v818
    %v834 = vpack.c.b16 %v821, %v820
    %v835 = vpack.c.b16 %v823, %v822
    %v836 = vpack.c.b16 %v825, %v824
    %v837 = vpack.c.b16 %v827, %v826
    %v838 = vpack.c.b16 %v829, %v828
    %v839 = vpack.c.b16 %v831, %v830
    %848 = vmatpush.bf16.msra.mxu0 %v839
    %849 = vmatpush.bf16.msra.mxu0 %v838
    %850 = vmatpush.bf16.msra.mxu0 %v837
    %851 = vmatpush.bf16.msra.mxu0 %v836
    %852 = vmatpush.bf16.msra.mxu0 %v835
    %853 = vmatpush.bf16.msra.mxu0 %v834
    %854 = vmatpush.bf16.msra.mxu0 %v833
    %855 = vmatpush.bf16.msra.mxu0 %v832
    %856 = vmatmul.bf16.gmra.mxu0 %v779
    %v857 = vpop.f32.mrf.mxu0
    %v858 = vadd.f32 %v798, %v857
    %v859 = vpop.f32.mrf.mxu0
    %860 = vdwg.mxu0
    %861 = vst [vmem:[#allocation14] sm:$0xff] %v858
    %862 = vst [vmem:[#allocation15] sm:$0xff] %v778
    %863 = vst [vmem:[#allocation17] sm:$0xff] %v776
    // Predicated region
    $region66: #{tpu_custom_call.1} parent=1 // pred_check
      _
    $region67: #{tpu_custom_call.1} parent=1 // pred_check_branch
      %865 = sbr.rel (0) target = $region69
    $region68: #{tpu_custom_call.1} parent=1 // pred_region
      %867 = vsyncadd [#allocation4], 0
      %s869 = sshll.u32 [#allocation14], 4
      %s870 = int_to_ptr.vmem [resolvable:$true] %s869
      %s871 = sshll.u32 %s9, 4
      %s872 = int_to_ptr.hbm [resolvable:$true] %s871
      %874 = dma.vmem_to_hbm [thread:$0]  %s870, 128, %s872, [#allocation4]
    $region69: #{tpu_custom_call.1} parent=1 // pred_fallthru
      _
    // Predicated region
    $region70: #{tpu_custom_call.1} parent=1 // pred_check
      _
    $region71: #{tpu_custom_call.1} parent=1 // pred_check_branch
      %876 = sbr.rel (0) target = $region73
    $region72: #{tpu_custom_call.1} parent=1 // pred_region
      %878 = vsyncadd [#allocation16], 0
      %s880 = sshll.u32 [#allocation15], 4
      %s881 = int_to_ptr.vmem [resolvable:$true] %s880
      %s882 = sshll.u32 %s10, 4
      %s883 = int_to_ptr.hbm [resolvable:$true] %s882
      %885 = dma.vmem_to_hbm [thread:$0]  %s881, 128, %s883, [#allocation16]
    $region73: #{tpu_custom_call.1} parent=1 // pred_fallthru
      _
    // Predicated region
    $region74: #{tpu_custom_call.1} parent=1 // pred_check
      _
    $region75: #{tpu_custom_call.1} parent=1 // pred_check_branch
      %887 = sbr.rel (0) target = $region77
    $region76: #{tpu_custom_call.1} parent=1 // pred_region
      %889 = vsyncadd [#allocation16], 0
      %s891 = sshll.u32 [#allocation17], 4
      %s892 = int_to_ptr.vmem [resolvable:$true] %s891
      %s893 = sshll.u32 %s11, 4
      %s894 = int_to_ptr.hbm [resolvable:$true] %s893
      %896 = dma.vmem_to_hbm [thread:$0]  %s892, 128, %s894, [#allocation16]
    $region77: #{tpu_custom_call.1} parent=1 // pred_fallthru
      _
    // Predicated region
    $region78: #{tpu_custom_call.1} parent=1 // pred_check
      _
    $region79: #{tpu_custom_call.1} parent=1 // pred_check_branch
      %898 = sbr.rel (0) target = $region81
    $region80: #{tpu_custom_call.1} parent=1 // pred_region
      %900 = dma.done [#allocation4], 128
    $region81: #{tpu_custom_call.1} parent=1 // pred_fallthru
      _
    // Predicated region
    $region82: #{tpu_custom_call.1} parent=1 // pred_check
      _
    $region83: #{tpu_custom_call.1} parent=1 // pred_check_branch
      %902 = sbr.rel (0) target = $region85
    $region84: #{tpu_custom_call.1} parent=1 // pred_region
      %904 = dma.done [#allocation16], 128
    $region85: #{tpu_custom_call.1} parent=1 // pred_fallthru
      _
    // Predicated region
    $region86: #{tpu_custom_call.1} parent=1 // pred_check
      _
    $region87: #{tpu_custom_call.1} parent=1 // pred_check_branch
      %906 = sbr.rel (0) target = $region89
    $region88: #{tpu_custom_call.1} parent=1 // pred_region
      %908 = dma.done [#allocation16], 128
    $region89: #{tpu_custom_call.1} parent=1 // pred_fallthru
      _
    %909 = vsyncpa [#allocation3], 1
    %910 = vsyncpa [#allocation6], 1
    %911 = vsyncpa [#allocation9], 1
    %912 = vsyncpa [#allocation12], 1
    %913 = vsyncpa [#allocation4], 1
    %914 = vsyncpa [#allocation16], 1

// kernel: tpu_custom_call.1
$region0: #{tpu_custom_call.1}
  #allocation0 [shape = 'u32[]', space=smem, size = 0x4, offset = 0x4, fixed_abs, tag = 'smem constant byte address 0x4 - core index']
  #allocation1 [shape = 'u32[72,128]{1,0:T(1,128)}', space=vmem, size = 0x9000, scoped, tag = 'internal scratch']
  %s0 = inlined_call_operand.hbm [shape: bf16[8,128], index: 0, kind: input, shape index: {}]
  %s1 = inlined_call_operand.hbm [shape: f32[8,128], index: 1, kind: input, shape index: {}]
  %s2 = inlined_call_operand.hbm [shape: f32[8,128], index: 2, kind: input, shape index: {}]
  %s3 = inlined_call_operand.hbm [shape: bf16[128,128], index: 3, kind: input, shape index: {}]
  %s4 = inlined_call_operand.vmem [shape: f32[1,128], index: 4, kind: input, shape index: {}]
  %s5 = inlined_call_operand.hbm [shape: bf16[128,512], index: 5, kind: input, shape index: {}]
  %s6 = inlined_call_operand.hbm [shape: bf16[128,512], index: 6, kind: input, shape index: {}]
  %s7 = inlined_call_operand.hbm [shape: bf16[128,128], index: 7, kind: input, shape index: {}]
  %s8 = inlined_call_operand.vmem [shape: f32[1,128], index: 8, kind: input, shape index: {}]
  %s9 = inlined_call_operand.hbm [shape: f32[8,128], index: 9, kind: output, shape index: {0}]
  %s10 = inlined_call_operand.hbm [shape: f32[8,128], index: 10, kind: output, shape index: {1}]
  %s11 = inlined_call_operand.hbm [shape: f32[8,128], index: 11, kind: output, shape index: {2}]
  %12 = xla_tuple %s9, %s10, %s11
  %s13 = sld [smem:[#allocation0]]
  $region90: #{tpu_custom_call.1} parent=0
    _
  %s15 = ssub.s32 1, %s13
  %s16 = scalar_select 0, %s15, %s13
  $region1: #{tpu_custom_call.1} parent=0
    #allocation2 [shape = 'u8[2048]{0}', space=vmem, size = 0x800, scoped, tag = 'input window, operand 0, single buffered']
    #allocation3 [shape = 's32[1]{0}', space=sflag, size = 0x4, scoped, tag = 'scoped memory for tpu_custom_call.1']
    #allocation4 [shape = 's32[1]{0}', space=sflag, size = 0x4, scoped, tag = 'scoped memory for tpu_custom_call.1']
    #allocation5 [shape = 'u8[4096]{0}', space=vmem, size = 0x1000, scoped, tag = 'input window, operand 1, single buffered']
    #allocation6 [shape = 's32[1]{0}', space=sflag, size = 0x4, scoped, tag = 'scoped memory for tpu_custom_call.1']
    #allocation7 [shape = 'u8[4096]{0}', space=vmem, size = 0x1000, scoped, tag = 'input window, operand 2, single buffered']
    #allocation8 [shape = 'u8[32768]{0}', space=vmem, size = 0x8000, scoped, tag = 'input window, operand 3, single buffered']
    #allocation9 [shape = 's32[1]{0}', space=sflag, size = 0x4, scoped, tag = 'scoped memory for tpu_custom_call.1']
    #allocation10 [shape = 'u8[131072]{0}', space=vmem, size = 0x20000, scoped, tag = 'input window, operand 5, single buffered']
    #allocation11 [shape = 'u8[131072]{0}', space=vmem, size = 0x20000, scoped, tag = 'input window, operand 6, single buffered']
    #allocation12 [shape = 's32[1]{0}', space=sflag, size = 0x4, scoped, tag = 'scoped memory for tpu_custom_call.1']
    #allocation13 [shape = 'u8[32768]{0}', space=vmem, size = 0x8000, scoped, tag = 'input window, operand 7, single buffered']
    #allocation14 [shape = 'u8[4096]{0}', space=vmem, size = 0x1000, scoped, tag = 'output window, operand 0, single buffered']
    #allocation15 [shape = 'u8[4096]{0}', space=vmem, size = 0x1000, scoped, tag = 'output window, operand 1, single buffered']
    #allocation16 [shape = 's32[1]{0}', space=sflag, size = 0x4, scoped, tag = 'scoped memory for tpu_custom_call.1']
    #allocation17 [shape = 'u8[4096]{0}', space=vmem, size = 0x1000, scoped, tag = 'output window, operand 2, single buffered']
    %17 = vsyncpa [#allocation3], 0
    %18 = vsyncpa [#allocation6], 0
    %19 = vsyncpa [#allocation9], 0
    %20 = vsyncpa [#allocation12], 0
    %21 = vsyncpa [#allocation4], 0
    %22 = vsyncpa [#allocation16], 0
    // Predicated region
    $region2: #{tpu_custom_call.1} parent=1 // pred_check
      _
    $region3: #{tpu_custom_call.1} parent=1 // pred_check_branch
      %24 = sbr.rel (0) target = $region5
    $region4: #{tpu_custom_call.1} parent=1 // pred_region
      %26 = vsyncadd [#allocation3], 0
      %s28 = sshll.u32 %s0, 4
      %s29 = int_to_ptr.hbm [resolvable:$true] %s28
      %s30 = sshll.u32 [#allocation2], 4
      %s31 = int_to_ptr.vmem [resolvable:$true] %s30
      %33 = dma.hbm_to_vmem [thread:$0]  %s29, 64, %s31, [#allocation3]
    $region5: #{tpu_custom_call.1} parent=1 // pred_fallthru
      _
    // Predicated region
    $region6: #{tpu_custom_call.1} parent=1 // pred_check
      _
    $region7: #{tpu_custom_call.1} parent=1 // pred_check_branch
      %35 = sbr.rel (0) target = $region9
    $region8: #{tpu_custom_call.1} parent=1 // pred_region
      %37 = vsyncadd [#allocation6], 0
      %s39 = sshll.u32 %s1, 4
      %s40 = int_to_ptr.hbm [resolvable:$true] %s39
      %s41 = sshll.u32 [#allocation5], 4
      %s42 = int_to_ptr.vmem [resolvable:$true] %s41
      %44 = dma.hbm_to_vmem [thread:$0]  %s40, 128, %s42, [#allocation6]
    $region9: #{tpu_custom_call.1} parent=1 // pred_fallthru
      _
    // Predicated region
    $region10: #{tpu_custom_call.1} parent=1 // pred_check
      _
    $region11: #{tpu_custom_call.1} parent=1 // pred_check_branch
      %46 = sbr.rel (0) target = $region13
    $region12: #{tpu_custom_call.1} parent=1 // pred_region
      %48 = vsyncadd [#allocation6], 0
      %s50 = sshll.u32 %s2, 4
      %s51 = int_to_ptr.hbm [resolvable:$true] %s50
      %s52 = sshll.u32 [#allocation7], 4
      %s53 = int_to_ptr.vmem [resolvable:$true] %s52
      %55 = dma.hbm_to_vmem [thread:$0]  %s51, 128, %s53, [#allocation6]
    $region13: #{tpu_custom_call.1} parent=1 // pred_fallthru
      _
    // Predicated region
    $region14: #{tpu_custom_call.1} parent=1 // pred_check
      _
    $region15: #{tpu_custom_call.1} parent=1 // pred_check_branch
      %57 = sbr.rel (0) target = $region17
    $region16: #{tpu_custom_call.1} parent=1 // pred_region
      %59 = vsyncadd [#allocation9], 0
      %s60 = sshll.u32 %s3, 4
      %s61 = int_to_ptr.hbm [resolvable:$true] %s60
      %s62 = sshll.u32 [#allocation8], 4
      %s63 = int_to_ptr.vmem [resolvable:$true] %s62
      %68 = dma.hbm_to_vmem [thread:$0]  %s61, 1024, %s63, [#allocation9], 64, 64, 4
    $region17: #{tpu_custom_call.1} parent=1 // pred_fallthru
      _
    // Predicated region
    $region18: #{tpu_custom_call.1} parent=1 // pred_check
      _
    $region19: #{tpu_custom_call.1} parent=1 // pred_check_branch
      %70 = sbr.rel (0) target = $region21
    $region20: #{tpu_custom_call.1} parent=1 // pred_region
      _
    $region21: #{tpu_custom_call.1} parent=1 // pred_fallthru
      _
    // Predicated region
    $region22: #{tpu_custom_call.1} parent=1 // pred_check
      _
    $region23: #{tpu_custom_call.1} parent=1 // pred_check_branch
      %72 = sbr.rel (0) target = $region25
    $region24: #{tpu_custom_call.1} parent=1 // pred_region
      %74 = vsyncadd [#allocation9], 0
      %s75 = sshll.u32 %s5, 4
      %s76 = int_to_ptr.hbm [resolvable:$true] %s75
      %s77 = sshll.u32 [#allocation10], 4
      %s78 = int_to_ptr.vmem [resolvable:$true] %s77
      %83 = dma.hbm_to_vmem [thread:$0]  %s76, 4096, %s78, [#allocation9], 256, 256, 16
    $region25: #{tpu_custom_call.1} parent=1 // pred_fallthru
      _
    // Predicated region
    $region26: #{tpu_custom_call.1} parent=1 // pred_check
      _
    $region27: #{tpu_custom_call.1} parent=1 // pred_check_branch
      %85 = sbr.rel (0) target = $region29
    $region28: #{tpu_custom_call.1} parent=1 // pred_region
      %87 = vsyncadd [#allocation12], 0
      %s88 = sshll.u32 %s6, 4
      %s89 = int_to_ptr.hbm [resolvable:$true] %s88
      %s90 = sshll.u32 [#allocation11], 4
      %s91 = int_to_ptr.vmem [resolvable:$true] %s90
      %96 = dma.hbm_to_vmem [thread:$0]  %s89, 4096, %s91, [#allocation12], 256, 256, 16
    $region29: #{tpu_custom_call.1} parent=1 // pred_fallthru
      _
    // Predicated region
    $region30: #{tpu_custom_call.1} parent=1 // pred_check
      _
    $region31: #{tpu_custom_call.1} parent=1 // pred_check_branch
      %98 = sbr.rel (0) target = $region33
    $region32: #{tpu_custom_call.1} parent=1 // pred_region
      %100 = vsyncadd [#allocation12], 0
      %s101 = sshll.u32 %s7, 4
      %s102 = int_to_ptr.hbm [resolvable:$true] %s101
      %s103 = sshll.u32 [#allocation13], 4
      %s104 = int_to_ptr.vmem [resolvable:$true] %s103
      %109 = dma.hbm_to_vmem [thread:$0]  %s102, 1024, %s104, [#allocation12], 64, 64, 4
    $region33: #{tpu_custom_call.1} parent=1 // pred_fallthru
      _
    // Predicated region
    $region34: #{tpu_custom_call.1} parent=1 // pred_check
      _
    $region35: #{tpu_custom_call.1} parent=1 // pred_check_branch
      %111 = sbr.rel (0) target = $region37
    $region36: #{tpu_custom_call.1} parent=1 // pred_region
      _
    $region37: #{tpu_custom_call.1} parent=1 // pred_fallthru
      _
    // Predicated region
    $region38: #{tpu_custom_call.1} parent=1 // pred_check
      _
    $region39: #{tpu_custom_call.1} parent=1 // pred_check_branch
      %113 = sbr.rel (0) target = $region41
    $region40: #{tpu_custom_call.1} parent=1 // pred_region
      %115 = dma.done [#allocation3], 64
    $region41: #{tpu_custom_call.1} parent=1 // pred_fallthru
      _
    // Predicated region
    $region42: #{tpu_custom_call.1} parent=1 // pred_check
      _
    $region43: #{tpu_custom_call.1} parent=1 // pred_check_branch
      %117 = sbr.rel (0) target = $region45
    $region44: #{tpu_custom_call.1} parent=1 // pred_region
      %119 = dma.done [#allocation6], 128
    $region45: #{tpu_custom_call.1} parent=1 // pred_fallthru
      _
    // Predicated region
    $region46: #{tpu_custom_call.1} parent=1 // pred_check
      _
    $region47: #{tpu_custom_call.1} parent=1 // pred_check_branch
      %121 = sbr.rel (0) target = $region49
    $region48: #{tpu_custom_call.1} parent=1 // pred_region
      %123 = dma.done [#allocation6], 128
    $region49: #{tpu_custom_call.1} parent=1 // pred_fallthru
      _
    // Predicated region
    $region50: #{tpu_custom_call.1} parent=1 // pred_check
      _
    $region51: #{tpu_custom_call.1} parent=1 // pred_check_branch
      %125 = sbr.rel (0) target = $region53
    $region52: #{tpu_custom_call.1} parent=1 // pred_region
      %127 = dma.done [#allocation9], 1024
    $region53: #{tpu_custom_call.1} parent=1 // pred_fallthru
      _
    // Predicated region
    $region54: #{tpu_custom_call.1} parent=1 // pred_check
      _
    $region55: #{tpu_custom_call.1} parent=1 // pred_check_branch
      %129 = sbr.rel (0) target = $region57
    $region56: #{tpu_custom_call.1} parent=1 // pred_region
      %131 = dma.done [#allocation9], 4096
    $region57: #{tpu_custom_call.1} parent=1 // pred_fallthru
      _
    // Predicated region
    $region58: #{tpu_custom_call.1} parent=1 // pred_check
      _
    $region59: #{tpu_custom_call.1} parent=1 // pred_check_branch
      %133 = sbr.rel (0) target = $region61
    $region60: #{tpu_custom_call.1} parent=1 // pred_region
      %135 = dma.done [#allocation12], 4096
    $region61: #{tpu_custom_call.1} parent=1 // pred_fallthru
      _
    // Predicated region
    $region62: #{tpu_custom_call.1} parent=1 // pred_check
      _
    $region63: #{tpu_custom_call.1} parent=1 // pred_check_branch
      %137 = sbr.rel (0) target = $region65
    $region64: #{tpu_custom_call.1} parent=1 // pred_region
      %139 = dma.done [#allocation12], 1024
    $region65: #{tpu_custom_call.1} parent=1 // pred_fallthru
      _
    %v140 = vld [vmem:[#allocation2] sm:$0xf]
    %v141 = vld [vmem:[#allocation5] sm:$0xff]
    %v142 = vld [vmem:[#allocation7] sm:$0xff]
    %v143 = vld [vmem:[#allocation8] sm:$0xf]
    %v144 = vld [vmem:[#allocation8 + $0x4] sm:$0xf]
    %v145 = vld [vmem:[#allocation8 + $0x8] sm:$0xf]
    %v146 = vld [vmem:[#allocation8 + $0xc] sm:$0xf]
    %v147 = vld [vmem:[#allocation8 + $0x10] sm:$0xf]
    %v148 = vld [vmem:[#allocation8 + $0x14] sm:$0xf]
    %v149 = vld [vmem:[#allocation8 + $0x18] sm:$0xf]
    %v150 = vld [vmem:[#allocation8 + $0x1c] sm:$0xf]
    %v151 = vld [vmem:[#allocation8 + $0x20] sm:$0xf]
    %v152 = vld [vmem:[#allocation8 + $0x24] sm:$0xf]
    %v153 = vld [vmem:[#allocation8 + $0x28] sm:$0xf]
    %v154 = vld [vmem:[#allocation8 + $0x2c] sm:$0xf]
    %v155 = vld [vmem:[#allocation8 + $0x30] sm:$0xf]
    %v156 = vld [vmem:[#allocation8 + $0x34] sm:$0xf]
    %v157 = vld [vmem:[#allocation8 + $0x38] sm:$0xf]
    %v158 = vld [vmem:[#allocation8 + $0x3c] sm:$0xf]
    %v159 = vld [vmem:[%s4] sm:$0x1]
    %v161 = vperm.slane %v159, 0
    %v179 = vunpack.c.l.b16 %v143
    %v180 = vunpack.c.l.b16 %v144
    %v181 = vunpack.c.l.b16 %v145
    %v182 = vunpack.c.l.b16 %v146
    %v183 = vunpack.c.l.b16 %v147
    %v184 = vunpack.c.l.b16 %v148
    %v185 = vunpack.c.l.b16 %v149
    %v186 = vunpack.c.l.b16 %v150
    %v187 = vunpack.c.l.b16 %v151
    %v188 = vunpack.c.l.b16 %v152
    %v189 = vunpack.c.l.b16 %v153
    %v190 = vunpack.c.l.b16 %v154
    %v191 = vunpack.c.l.b16 %v155
    %v192 = vunpack.c.l.b16 %v156
    %v193 = vunpack.c.l.b16 %v157
    %v194 = vunpack.c.l.b16 %v158
    %v195 = vpack.c.b16 %v180, %v179
    %v196 = vpack.c.b16 %v182, %v181
    %v197 = vpack.c.b16 %v184, %v183
    %v198 = vpack.c.b16 %v186, %v185
    %v199 = vpack.c.b16 %v188, %v187
    %v200 = vpack.c.b16 %v190, %v189
    %v201 = vpack.c.b16 %v192, %v191
    %v202 = vpack.c.b16 %v194, %v193
    %211 = vmatpush.bf16.msra.mxu0 %v202
    %212 = vmatpush.bf16.msra.mxu0 %v201
    %213 = vmatpush.bf16.msra.mxu0 %v200
    %214 = vmatpush.bf16.msra.mxu0 %v199
    %215 = vmatpush.bf16.msra.mxu0 %v198
    %216 = vmatpush.bf16.msra.mxu0 %v197
    %217 = vmatpush.bf16.msra.mxu0 %v196
    %218 = vmatpush.bf16.msra.mxu0 %v195
    %219 = vmatmul.bf16.gmra.mxu0 %v140
    %v220 = vpop.f32.mrf.mxu0
    %v221 = vadd.f32 %v161, %v220
    %v222 = vpop.f32.mrf.mxu0
    %223 = vdwg.mxu0
    %v224 = vmul.f32 %v221, 0.1
    %v225 = vmax.f32 %v221, %v224
    %v226 = vpack.c.bf16 %v225, %v225
    %v227 = vld [vmem:[#allocation10] sm:$0xff]
    %v228 = vld [vmem:[#allocation10 + $0x8] sm:$0xff]
    %v229 = vld [vmem:[#allocation10 + $0x10] sm:$0xff]
    %v230 = vld [vmem:[#allocation10 + $0x18] sm:$0xff]
    %v231 = vld [vmem:[#allocation10 + $0x20] sm:$0xff]
    %v232 = vld [vmem:[#allocation10 + $0x28] sm:$0xff]
    %v233 = vld [vmem:[#allocation10 + $0x30] sm:$0xff]
    %v234 = vld [vmem:[#allocation10 + $0x38] sm:$0xff]
    %v235 = vld [vmem:[#allocation10 + $0x40] sm:$0xff]
    %v236 = vld [vmem:[#allocation10 + $0x48] sm:$0xff]
    %v237 = vld [vmem:[#allocation10 + $0x50] sm:$0xff]
    %v238 = vld [vmem:[#allocation10 + $0x58] sm:$0xff]
    %v239 = vld [vmem:[#allocation10 + $0x60] sm:$0xff]
    %v240 = vld [vmem:[#allocation10 + $0x68] sm:$0xff]
    %v241 = vld [vmem:[#allocation10 + $0x70] sm:$0xff]
    %v242 = vld [vmem:[#allocation10 + $0x78] sm:$0xff]
    %v243 = vld [vmem:[#allocation10 + $0x80] sm:$0xff]
    %v244 = vld [vmem:[#allocation10 + $0x88] sm:$0xff]
    %v245 = vld [vmem:[#allocation10 + $0x90] sm:$0xff]
    %v246 = vld [vmem:[#allocation10 + $0x98] sm:$0xff]
    %v247 = vld [vmem:[#allocation10 + $0xa0] sm:$0xff]
    %v248 = vld [vmem:[#allocation10 + $0xa8] sm:$0xff]
    %v249 = vld [vmem:[#allocation10 + $0xb0] sm:$0xff]
    %v250 = vld [vmem:[#allocation10 + $0xb8] sm:$0xff]
    %v251 = vld [vmem:[#allocation10 + $0xc0] sm:$0xff]
    %v252 = vld [vmem:[#allocation10 + $0xc8] sm:$0xff]
    %v253 = vld [vmem:[#allocation10 + $0xd0] sm:$0xff]
    %v254 = vld [vmem:[#allocation10 + $0xd8] sm:$0xff]
    %v255 = vld [vmem:[#allocation10 + $0xe0] sm:$0xff]
    %v256 = vld [vmem:[#allocation10 + $0xe8] sm:$0xff]
    %v257 = vld [vmem:[#allocation10 + $0xf0] sm:$0xff]
    %v258 = vld [vmem:[#allocation10 + $0xf8] sm:$0xff]
    %v259 = vpack.c.bf16 %v141, %v141
    %v260 = vld [vmem:[#allocation11] sm:$0xff]
    %v261 = vld [vmem:[#allocation11 + $0x8] sm:$0xff]
    %v262 = vld [vmem:[#allocation11 + $0x10] sm:$0xff]
    %v263 = vld [vmem:[#allocation11 + $0x18] sm:$0xff]
    %v264 = vld [vmem:[#allocation11 + $0x20] sm:$0xff]
    %v265 = vld [vmem:[#allocation11 + $0x28] sm:$0xff]
    %v266 = vld [vmem:[#allocation11 + $0x30] sm:$0xff]
    %v267 = vld [vmem:[#allocation11 + $0x38] sm:$0xff]
    %v268 = vld [vmem:[#allocation11 + $0x40] sm:$0xff]
    %v269 = vld [vmem:[#allocation11 + $0x48] sm:$0xff]
    %v270 = vld [vmem:[#allocation11 + $0x50] sm:$0xff]
    %v271 = vld [vmem:[#allocation11 + $0x58] sm:$0xff]
    %v272 = vld [vmem:[#allocation11 + $0x60] sm:$0xff]
    %v273 = vld [vmem:[#allocation11 + $0x68] sm:$0xff]
    %v274 = vld [vmem:[#allocation11 + $0x70] sm:$0xff]
    %v275 = vld [vmem:[#allocation11 + $0x78] sm:$0xff]
    %v276 = vld [vmem:[#allocation11 + $0x80] sm:$0xff]
    %v277 = vld [vmem:[#allocation11 + $0x88] sm:$0xff]
    %v278 = vld [vmem:[#allocation11 + $0x90] sm:$0xff]
    %v279 = vld [vmem:[#allocation11 + $0x98] sm:$0xff]
    %v280 = vld [vmem:[#allocation11 + $0xa0] sm:$0xff]
    %v281 = vld [vmem:[#allocation11 + $0xa8] sm:$0xff]
    %v282 = vld [vmem:[#allocation11 + $0xb0] sm:$0xff]
    %v283 = vld [vmem:[#allocation11 + $0xb8] sm:$0xff]
    %v284 = vld [vmem:[#allocation11 + $0xc0] sm:$0xff]
    %v285 = vld [vmem:[#allocation11 + $0xc8] sm:$0xff]
    %v286 = vld [vmem:[#allocation11 + $0xd0] sm:$0xff]
    %v287 = vld [vmem:[#allocation11 + $0xd8] sm:$0xff]
    %v288 = vld [vmem:[#allocation11 + $0xe0] sm:$0xff]
    %v289 = vld [vmem:[#allocation11 + $0xe8] sm:$0xff]
    %v290 = vld [vmem:[#allocation11 + $0xf0] sm:$0xff]
    %v291 = vld [vmem:[#allocation11 + $0xf8] sm:$0xff]
    %v324 = vunpack.c.l.b16 %v260
    %v325 = vunpack.c.h.b16 %v260
    %v326 = vunpack.c.l.b16 %v261
    %v327 = vunpack.c.h.b16 %v261
    %v328 = vunpack.c.l.b16 %v262
    %v329 = vunpack.c.h.b16 %v262
    %v330 = vunpack.c.l.b16 %v263
    %v331 = vunpack.c.h.b16 %v263
    %v332 = vunpack.c.l.b16 %v264
    %v333 = vunpack.c.h.b16 %v264
    %v334 = vunpack.c.l.b16 %v265
    %v335 = vunpack.c.h.b16 %v265
    %v336 = vunpack.c.l.b16 %v266
    %v337 = vunpack.c.h.b16 %v266
    %v338 = vunpack.c.l.b16 %v267
    %v339 = vunpack.c.h.b16 %v267
    %v340 = vunpack.c.l.b16 %v268
    %v341 = vunpack.c.h.b16 %v268
    %v342 = vunpack.c.l.b16 %v269
    %v343 = vunpack.c.h.b16 %v269
    %v344 = vunpack.c.l.b16 %v270
    %v345 = vunpack.c.h.b16 %v270
    %v346 = vunpack.c.l.b16 %v271
    %v347 = vunpack.c.h.b16 %v271
    %v348 = vunpack.c.l.b16 %v272
    %v349 = vunpack.c.h.b16 %v272
    %v350 = vunpack.c.l.b16 %v273
    %v351 = vunpack.c.h.b16 %v273
    %v352 = vunpack.c.l.b16 %v274
    %v353 = vunpack.c.h.b16 %v274
    %v354 = vunpack.c.l.b16 %v275
    %v355 = vunpack.c.h.b16 %v275
    %v356 = vunpack.c.l.b16 %v276
    %v357 = vunpack.c.h.b16 %v276
    %v358 = vunpack.c.l.b16 %v277
    %v359 = vunpack.c.h.b16 %v277
    %v360 = vunpack.c.l.b16 %v278
    %v361 = vunpack.c.h.b16 %v278
    %v362 = vunpack.c.l.b16 %v279
    %v363 = vunpack.c.h.b16 %v279
    %v364 = vunpack.c.l.b16 %v280
    %v365 = vunpack.c.h.b16 %v280
    %v366 = vunpack.c.l.b16 %v281
    %v367 = vunpack.c.h.b16 %v281
    %v368 = vunpack.c.l.b16 %v282
    %v369 = vunpack.c.h.b16 %v282
    %v370 = vunpack.c.l.b16 %v283
    %v371 = vunpack.c.h.b16 %v283
    %v372 = vunpack.c.l.b16 %v284
    %v373 = vunpack.c.h.b16 %v284
    %v374 = vunpack.c.l.b16 %v285
    %v375 = vunpack.c.h.b16 %v285
    %v376 = vunpack.c.l.b16 %v286
    %v377 = vunpack.c.h.b16 %v286
    %v378 = vunpack.c.l.b16 %v287
    %v379 = vunpack.c.h.b16 %v287
    %v380 = vunpack.c.l.b16 %v288
    %v381 = vunpack.c.h.b16 %v288
    %v382 = vunpack.c.l.b16 %v289
    %v383 = vunpack.c.h.b16 %v289
    %v384 = vunpack.c.l.b16 %v290
    %v385 = vunpack.c.h.b16 %v290
    %v386 = vunpack.c.l.b16 %v291
    %v387 = vunpack.c.h.b16 %v291
    %v388 = vpack.c.b16 %v328, %v324
    %v389 = vpack.c.b16 %v329, %v325
    %v390 = vpack.c.b16 %v330, %v326
    %v391 = vpack.c.b16 %v331, %v327
    %v392 = vpack.c.b16 %v336, %v332
    %v393 = vpack.c.b16 %v337, %v333
    %v394 = vpack.c.b16 %v338, %v334
    %v395 = vpack.c.b16 %v339, %v335
    %v396 = vpack.c.b16 %v344, %v340
    %v397 = vpack.c.b16 %v345, %v341
    %v398 = vpack.c.b16 %v346, %v342
    %v399 = vpack.c.b16 %v347, %v343
    %v400 = vpack.c.b16 %v352, %v348
    %v401 = vpack.c.b16 %v353, %v349
    %v402 = vpack.c.b16 %v354, %v350
    %v403 = vpack.c.b16 %v355, %v351
    %v404 = vpack.c.b16 %v360, %v356
    %v405 = vpack.c.b16 %v361, %v357
    %v406 = vpack.c.b16 %v362, %v358
    %v407 = vpack.c.b16 %v363, %v359
    %v408 = vpack.c.b16 %v368, %v364
    %v409 = vpack.c.b16 %v369, %v365
    %v410 = vpack.c.b16 %v370, %v366
    %v411 = vpack.c.b16 %v371, %v367
    %v412 = vpack.c.b16 %v376, %v372
    %v413 = vpack.c.b16 %v377, %v373
    %v414 = vpack.c.b16 %v378, %v374
    %v415 = vpack.c.b16 %v379, %v375
    %v416 = vpack.c.b16 %v384, %v380
    %v417 = vpack.c.b16 %v385, %v381
    %v418 = vpack.c.b16 %v386, %v382
    %v419 = vpack.c.b16 %v387, %v383
    %452 = vmatpush.bf16.msra.mxu0 %v416
    %453 = vmatpush.bf16.msra.mxu0 %v412
    %454 = vmatpush.bf16.msra.mxu0 %v408
    %455 = vmatpush.bf16.msra.mxu0 %v404
    %456 = vmatpush.bf16.msra.mxu0 %v400
    %457 = vmatpush.bf16.msra.mxu0 %v396
    %458 = vmatpush.bf16.msra.mxu0 %v392
    %459 = vmatpush.bf16.msra.mxu0 %v388
    %460 = vmatmul.bf16.gmra.mxu0 %v259
    %v461 = vpop.f32.mrf.mxu0
    %v462 = vadd.f32 0.0, %v461
    %v463 = vpop.f32.mrf.mxu0
    %464 = vdwg.mxu0
    %465 = vmatpush.bf16.msra.mxu0 %v417
    %466 = vmatpush.bf16.msra.mxu0 %v413
    %467 = vmatpush.bf16.msra.mxu0 %v409
    %468 = vmatpush.bf16.msra.mxu0 %v405
    %469 = vmatpush.bf16.msra.mxu0 %v401
    %470 = vmatpush.bf16.msra.mxu0 %v397
    %471 = vmatpush.bf16.msra.mxu0 %v393
    %472 = vmatpush.bf16.msra.mxu0 %v389
    %473 = vmatmul.bf16.gmra.mxu0 %v259
    %v474 = vpop.f32.mrf.mxu0
    %v475 = vadd.f32 0.0, %v474
    %v476 = vpop.f32.mrf.mxu0
    %477 = vdwg.mxu0
    %478 = vmatpush.bf16.msra.mxu0 %v418
    %479 = vmatpush.bf16.msra.mxu0 %v414
    %480 = vmatpush.bf16.msra.mxu0 %v410
    %481 = vmatpush.bf16.msra.mxu0 %v406
    %482 = vmatpush.bf16.msra.mxu0 %v402
    %483 = vmatpush.bf16.msra.mxu0 %v398
    %484 = vmatpush.bf16.msra.mxu0 %v394
    %485 = vmatpush.bf16.msra.mxu0 %v390
    %486 = vmatmul.bf16.gmra.mxu0 %v259
    %v487 = vpop.f32.mrf.mxu0
    %v488 = vadd.f32 0.0, %v487
    %v489 = vpop.f32.mrf.mxu0
    %490 = vdwg.mxu0
    %491 = vmatpush.bf16.msra.mxu0 %v419
    %492 = vmatpush.bf16.msra.mxu0 %v415
    %493 = vmatpush.bf16.msra.mxu0 %v411
    %494 = vmatpush.bf16.msra.mxu0 %v407
    %495 = vmatpush.bf16.msra.mxu0 %v403
    %496 = vmatpush.bf16.msra.mxu0 %v399
    %497 = vmatpush.bf16.msra.mxu0 %v395
    %498 = vmatpush.bf16.msra.mxu0 %v391
    %499 = vmatmul.bf16.gmra.mxu0 %v259
    %v500 = vpop.f32.mrf.mxu0
    %v501 = vadd.f32 0.0, %v500
    %v502 = vpop.f32.mrf.mxu0
    %503 = vdwg.mxu0
    %v536 = vunpack.c.l.b16 %v227
    %v537 = vunpack.c.h.b16 %v227
    %v538 = vunpack.c.l.b16 %v228
    %v539 = vunpack.c.h.b16 %v228
    %v540 = vunpack.c.l.b16 %v229
    %v541 = vunpack.c.h.b16 %v229
    %v542 = vunpack.c.l.b16 %v230
    %v543 = vunpack.c.h.b16 %v230
    %v544 = vunpack.c.l.b16 %v231
    %v545 = vunpack.c.h.b16 %v231
    %v546 = vunpack.c.l.b16 %v232
    %v547 = vunpack.c.h.b16 %v232
    %v548 = vunpack.c.l.b16 %v233
    %v549 = vunpack.c.h.b16 %v233
    %v550 = vunpack.c.l.b16 %v234
    %v551 = vunpack.c.h.b16 %v234
    %v552 = vunpack.c.l.b16 %v235
    %v553 = vunpack.c.h.b16 %v235
    %v554 = vunpack.c.l.b16 %v236
    %v555 = vunpack.c.h.b16 %v236
    %v556 = vunpack.c.l.b16 %v237
    %v557 = vunpack.c.h.b16 %v237
    %v558 = vunpack.c.l.b16 %v238
    %v559 = vunpack.c.h.b16 %v238
    %v560 = vunpack.c.l.b16 %v239
    %v561 = vunpack.c.h.b16 %v239
    %v562 = vunpack.c.l.b16 %v240
    %v563 = vunpack.c.h.b16 %v240
    %v564 = vunpack.c.l.b16 %v241
    %v565 = vunpack.c.h.b16 %v241
    %v566 = vunpack.c.l.b16 %v242
    %v567 = vunpack.c.h.b16 %v242
    %v568 = vunpack.c.l.b16 %v243
    %v569 = vunpack.c.h.b16 %v243
    %v570 = vunpack.c.l.b16 %v244
    %v571 = vunpack.c.h.b16 %v244
    %v572 = vunpack.c.l.b16 %v245
    %v573 = vunpack.c.h.b16 %v245
    %v574 = vunpack.c.l.b16 %v246
    %v575 = vunpack.c.h.b16 %v246
    %v576 = vunpack.c.l.b16 %v247
    %v577 = vunpack.c.h.b16 %v247
    %v578 = vunpack.c.l.b16 %v248
    %v579 = vunpack.c.h.b16 %v248
    %v580 = vunpack.c.l.b16 %v249
    %v581 = vunpack.c.h.b16 %v249
    %v582 = vunpack.c.l.b16 %v250
    %v583 = vunpack.c.h.b16 %v250
    %v584 = vunpack.c.l.b16 %v251
    %v585 = vunpack.c.h.b16 %v251
    %v586 = vunpack.c.l.b16 %v252
    %v587 = vunpack.c.h.b16 %v252
    %v588 = vunpack.c.l.b16 %v253
    %v589 = vunpack.c.h.b16 %v253
    %v590 = vunpack.c.l.b16 %v254
    %v591 = vunpack.c.h.b16 %v254
    %v592 = vunpack.c.l.b16 %v255
    %v593 = vunpack.c.h.b16 %v255
    %v594 = vunpack.c.l.b16 %v256
    %v595 = vunpack.c.h.b16 %v256
    %v596 = vunpack.c.l.b16 %v257
    %v597 = vunpack.c.h.b16 %v257
    %v598 = vunpack.c.l.b16 %v258
    %v599 = vunpack.c.h.b16 %v258
    %v600 = vpack.c.b16 %v540, %v536
    %v601 = vpack.c.b16 %v541, %v537
    %v602 = vpack.c.b16 %v542, %v538
    %v603 = vpack.c.b16 %v543, %v539
    %v604 = vpack.c.b16 %v548, %v544
    %v605 = vpack.c.b16 %v549, %v545
    %v606 = vpack.c.b16 %v550, %v546
    %v607 = vpack.c.b16 %v551, %v547
    %v608 = vpack.c.b16 %v556, %v552
    %v609 = vpack.c.b16 %v557, %v553
    %v610 = vpack.c.b16 %v558, %v554
    %v611 = vpack.c.b16 %v559, %v555
    %v612 = vpack.c.b16 %v564, %v560
    %v613 = vpack.c.b16 %v565, %v561
    %v614 = vpack.c.b16 %v566, %v562
    %v615 = vpack.c.b16 %v567, %v563
    %v616 = vpack.c.b16 %v572, %v568
    %v617 = vpack.c.b16 %v573, %v569
    %v618 = vpack.c.b16 %v574, %v570
    %v619 = vpack.c.b16 %v575, %v571
    %v620 = vpack.c.b16 %v580, %v576
    %v621 = vpack.c.b16 %v581, %v577
    %v622 = vpack.c.b16 %v582, %v578
    %v623 = vpack.c.b16 %v583, %v579
    %v624 = vpack.c.b16 %v588, %v584
    %v625 = vpack.c.b16 %v589, %v585
    %v626 = vpack.c.b16 %v590, %v586
    %v627 = vpack.c.b16 %v591, %v587
    %v628 = vpack.c.b16 %v596, %v592
    %v629 = vpack.c.b16 %v597, %v593
    %v630 = vpack.c.b16 %v598, %v594
    %v631 = vpack.c.b16 %v599, %v595
    %664 = vmatpush.bf16.msra.mxu0 %v628
    %665 = vmatpush.bf16.msra.mxu0 %v624
    %666 = vmatpush.bf16.msra.mxu0 %v620
    %667 = vmatpush.bf16.msra.mxu0 %v616
    %668 = vmatpush.bf16.msra.mxu0 %v612
    %669 = vmatpush.bf16.msra.mxu0 %v608
    %670 = vmatpush.bf16.msra.mxu0 %v604
    %671 = vmatpush.bf16.msra.mxu0 %v600
    %672 = vmatmul.bf16.gmra.mxu0 %v226
    %v673 = vpop.f32.mrf.mxu0
    %v674 = vadd.f32 %v462, %v673
    %v675 = vpop.f32.mrf.mxu0
    %676 = vdwg.mxu0
    %677 = vmatpush.bf16.msra.mxu0 %v629
    %678 = vmatpush.bf16.msra.mxu0 %v625
    %679 = vmatpush.bf16.msra.mxu0 %v621
    %680 = vmatpush.bf16.msra.mxu0 %v617
    %681 = vmatpush.bf16.msra.mxu0 %v613
    %682 = vmatpush.bf16.msra.mxu0 %v609
    %683 = vmatpush.bf16.msra.mxu0 %v605
    %684 = vmatpush.bf16.msra.mxu0 %v601
    %685 = vmatmul.bf16.gmra.mxu0 %v226
    %v686 = vpop.f32.mrf.mxu0
    %v687 = vadd.f32 %v475, %v686
    %v688 = vpop.f32.mrf.mxu0
    %689 = vdwg.mxu0
    %690 = vmatpush.bf16.msra.mxu0 %v630
    %691 = vmatpush.bf16.msra.mxu0 %v626
    %692 = vmatpush.bf16.msra.mxu0 %v622
    %693 = vmatpush.bf16.msra.mxu0 %v618
    %694 = vmatpush.bf16.msra.mxu0 %v614
    %695 = vmatpush.bf16.msra.mxu0 %v610
    %696 = vmatpush.bf16.msra.mxu0 %v606
    %697 = vmatpush.bf16.msra.mxu0 %v602
    %698 = vmatmul.bf16.gmra.mxu0 %v226
    %v699 = vpop.f32.mrf.mxu0
    %v700 = vadd.f32 %v488, %v699
    %v701 = vpop.f32.mrf.mxu0
    %702 = vdwg.mxu0
    %703 = vmatpush.bf16.msra.mxu0 %v631
    %704 = vmatpush.bf16.msra.mxu0 %v627
    %705 = vmatpush.bf16.msra.mxu0 %v623
    %706 = vmatpush.bf16.msra.mxu0 %v619
    %707 = vmatpush.bf16.msra.mxu0 %v615
    %708 = vmatpush.bf16.msra.mxu0 %v611
    %709 = vmatpush.bf16.msra.mxu0 %v607
    %710 = vmatpush.bf16.msra.mxu0 %v603
    %711 = vmatmul.bf16.gmra.mxu0 %v226
    %v712 = vpop.f32.mrf.mxu0
    %v713 = vadd.f32 %v501, %v712
    %v714 = vpop.f32.mrf.mxu0
    %715 = vdwg.mxu0
    %v716 = vxor.u32 %v674, 2147483648
    %v717 = vxor.u32 %v687, 2147483648
    %v718 = vxor.u32 %v700, 2147483648
    %v719 = vmul.f32 %v716, 1.442695
    %v720 = vpow.pop %v719
    %v721 = vmul.f32 %v717, 1.442695
    %v722 = vpow.pop %v721
    %v723 = vmul.f32 %v718, 1.442695
    %v724 = vpow.pop %v723
    %v725 = vadd.f32 %v720, 1.0
    %v726 = vadd.f32 %v722, 1.0
    %v727 = vadd.f32 %v724, 1.0
    %v728 = vrcp.pop %v725
    %v729 = vmul.f32 %v725, %v728
    %v730 = vsub.f32 1.0, %v729
    %v731 = vmul.f32 %v728, %v730
    %v732 = vadd.f32 %v728, %v731
    %vm733 = vweird.f32 %v725
    %vm734 = vweird.f32 %v728
    %vm735 = vmor %vm733, %vm734
    %v736 = vsel %vm735, %v728, %v732
    %v737 = vand.u32 2147483647, %v725
    %vm738 = vcmp.eq.f32.partialorder %v737, 8.507059e+37
    %v739 = vand.u32 %v725, 2147483648
    %v740 = vor.u32 1.1754944e-38, %v739
    %v741 = vsel %vm738, %v740, %v736
    %v742 = vmul.f32 1.0, %v741
    %v743 = vrcp.pop %v726
    %v744 = vmul.f32 %v726, %v743
    %v745 = vsub.f32 1.0, %v744
    %v746 = vmul.f32 %v743, %v745
    %v747 = vadd.f32 %v743, %v746
    %vm748 = vweird.f32 %v726
    %vm749 = vweird.f32 %v743
    %vm750 = vmor %vm748, %vm749
    %v751 = vsel %vm750, %v743, %v747
    %v752 = vand.u32 2147483647, %v726
    %vm753 = vcmp.eq.f32.partialorder %v752, 8.507059e+37
    %v754 = vand.u32 %v726, 2147483648
    %v755 = vor.u32 1.1754944e-38, %v754
    %v756 = vsel %vm753, %v755, %v751
    %v757 = vmul.f32 1.0, %v756
    %v758 = vrcp.pop %v727
    %v759 = vmul.f32 %v727, %v758
    %v760 = vsub.f32 1.0, %v759
    %v761 = vmul.f32 %v758, %v760
    %v762 = vadd.f32 %v758, %v761
    %vm763 = vweird.f32 %v727
    %vm764 = vweird.f32 %v758
    %vm765 = vmor %vm763, %vm764
    %v766 = vsel %vm765, %v758, %v762
    %v767 = vand.u32 2147483647, %v727
    %vm768 = vcmp.eq.f32.partialorder %v767, 8.507059e+37
    %v769 = vand.u32 %v727, 2147483648
    %v770 = vor.u32 1.1754944e-38, %v769
    %v771 = vsel %vm768, %v770, %v766
    %v772 = vmul.f32 1.0, %v771
    %v773 = vtanh.pop %v713
    %v774 = vmul.f32 %v757, %v142
    %v775 = vmul.f32 %v742, %v773
    %v776 = vadd.f32 %v774, %v775
    %v777 = vtanh.pop %v776
    %v778 = vmul.f32 %v772, %v777
    %v779 = vpack.c.bf16 %v778, %v778
    %v780 = vld [vmem:[#allocation13] sm:$0xf]
    %v781 = vld [vmem:[#allocation13 + $0x4] sm:$0xf]
    %v782 = vld [vmem:[#allocation13 + $0x8] sm:$0xf]
    %v783 = vld [vmem:[#allocation13 + $0xc] sm:$0xf]
    %v784 = vld [vmem:[#allocation13 + $0x10] sm:$0xf]
    %v785 = vld [vmem:[#allocation13 + $0x14] sm:$0xf]
    %v786 = vld [vmem:[#allocation13 + $0x18] sm:$0xf]
    %v787 = vld [vmem:[#allocation13 + $0x1c] sm:$0xf]
    %v788 = vld [vmem:[#allocation13 + $0x20] sm:$0xf]
    %v789 = vld [vmem:[#allocation13 + $0x24] sm:$0xf]
    %v790 = vld [vmem:[#allocation13 + $0x28] sm:$0xf]
    %v791 = vld [vmem:[#allocation13 + $0x2c] sm:$0xf]
    %v792 = vld [vmem:[#allocation13 + $0x30] sm:$0xf]
    %v793 = vld [vmem:[#allocation13 + $0x34] sm:$0xf]
    %v794 = vld [vmem:[#allocation13 + $0x38] sm:$0xf]
    %v795 = vld [vmem:[#allocation13 + $0x3c] sm:$0xf]
    %v796 = vld [vmem:[%s8] sm:$0x1]
    %v798 = vperm.slane %v796, 0
    %v816 = vunpack.c.l.b16 %v780
    %v817 = vunpack.c.l.b16 %v781
    %v818 = vunpack.c.l.b16 %v782
    %v819 = vunpack.c.l.b16 %v783
    %v820 = vunpack.c.l.b16 %v784
    %v821 = vunpack.c.l.b16 %v785
    %v822 = vunpack.c.l.b16 %v786
    %v823 = vunpack.c.l.b16 %v787
    %v824 = vunpack.c.l.b16 %v788
    %v825 = vunpack.c.l.b16 %v789
    %v826 = vunpack.c.l.b16 %v790
    %v827 = vunpack.c.l.b16 %v791
    %v828 = vunpack.c.l.b16 %v792
    %v829 = vunpack.c.l.b16 %v793
    %v830 = vunpack.c.l.b16 %v794
    %v831 = vunpack.c.l.b16 %v795
    %v832 = vpack.c.b16 %v817, %v816
    %v833 = vpack.c.b16 %v819, %v818
    %v834 = vpack.c.b16 %v821, %v820
    %v835 = vpack.c.b16 %v823, %v822
    %v836 = vpack.c.b16 %v825, %v824
    %v837 = vpack.c.b16 %v827, %v826
    %v838 = vpack.c.b16 %v829, %v828
    %v839 = vpack.c.b16 %v831, %v830
    %848 = vmatpush.bf16.msra.mxu0 %v839
    %849 = vmatpush.bf16.msra.mxu0 %v838
    %850 = vmatpush.bf16.msra.mxu0 %v837
    %851 = vmatpush.bf16.msra.mxu0 %v836
    %852 = vmatpush.bf16.msra.mxu0 %v835
    %853 = vmatpush.bf16.msra.mxu0 %v834
    %854 = vmatpush.bf16.msra.mxu0 %v833
    %855 = vmatpush.bf16.msra.mxu0 %v832
    %856 = vmatmul.bf16.gmra.mxu0 %v779
    %v857 = vpop.f32.mrf.mxu0
    %v858 = vadd.f32 %v798, %v857
    %v859 = vpop.f32.mrf.mxu0
    %860 = vdwg.mxu0
    %861 = vst [vmem:[#allocation14] sm:$0xff] %v858
    %862 = vst [vmem:[#allocation15] sm:$0xff] %v778
    %863 = vst [vmem:[#allocation17] sm:$0xff] %v776
    // Predicated region
    $region66: #{tpu_custom_call.1} parent=1 // pred_check
      _
    $region67: #{tpu_custom_call.1} parent=1 // pred_check_branch
      %865 = sbr.rel (0) target = $region69
    $region68: #{tpu_custom_call.1} parent=1 // pred_region
      %867 = vsyncadd [#allocation4], 0
      %s869 = sshll.u32 [#allocation14], 4
      %s870 = int_to_ptr.vmem [resolvable:$true] %s869
      %s871 = sshll.u32 %s9, 4
      %s872 = int_to_ptr.hbm [resolvable:$true] %s871
      %874 = dma.vmem_to_hbm [thread:$0]  %s870, 128, %s872, [#allocation4]
    $region69: #{tpu_custom_call.1} parent=1 // pred_fallthru
      _
    // Predicated region
    $region70: #{tpu_custom_call.1} parent=1 // pred_check
      _
    $region71: #{tpu_custom_call.1} parent=1 // pred_check_branch
      %876 = sbr.rel (0) target = $region73
    $region72: #{tpu_custom_call.1} parent=1 // pred_region
      %878 = vsyncadd [#allocation16], 0
      %s880 = sshll.u32 [#allocation15], 4
      %s881 = int_to_ptr.vmem [resolvable:$true] %s880
      %s882 = sshll.u32 %s10, 4
      %s883 = int_to_ptr.hbm [resolvable:$true] %s882
      %885 = dma.vmem_to_hbm [thread:$0]  %s881, 128, %s883, [#allocation16]
    $region73: #{tpu_custom_call.1} parent=1 // pred_fallthru
      _
    // Predicated region
    $region74: #{tpu_custom_call.1} parent=1 // pred_check
      _
    $region75: #{tpu_custom_call.1} parent=1 // pred_check_branch
      %887 = sbr.rel (0) target = $region77
    $region76: #{tpu_custom_call.1} parent=1 // pred_region
      %889 = vsyncadd [#allocation16], 0
      %s891 = sshll.u32 [#allocation17], 4
      %s892 = int_to_ptr.vmem [resolvable:$true] %s891
      %s893 = sshll.u32 %s11, 4
      %s894 = int_to_ptr.hbm [resolvable:$true] %s893
      %896 = dma.vmem_to_hbm [thread:$0]  %s892, 128, %s894, [#allocation16]
    $region77: #{tpu_custom_call.1} parent=1 // pred_fallthru
      _
    // Predicated region
    $region78: #{tpu_custom_call.1} parent=1 // pred_check
      _
    $region79: #{tpu_custom_call.1} parent=1 // pred_check_branch
      %898 = sbr.rel (0) target = $region81
    $region80: #{tpu_custom_call.1} parent=1 // pred_region
      %900 = dma.done [#allocation4], 128
    $region81: #{tpu_custom_call.1} parent=1 // pred_fallthru
      _
    // Predicated region
    $region82: #{tpu_custom_call.1} parent=1 // pred_check
      _
    $region83: #{tpu_custom_call.1} parent=1 // pred_check_branch
      %902 = sbr.rel (0) target = $region85
    $region84: #{tpu_custom_call.1} parent=1 // pred_region
      %904 = dma.done [#allocation16], 128
    $region85: #{tpu_custom_call.1} parent=1 // pred_fallthru
      _
    // Predicated region
    $region86: #{tpu_custom_call.1} parent=1 // pred_check
      _
    $region87: #{tpu_custom_call.1} parent=1 // pred_check_branch
      %906 = sbr.rel (0) target = $region89
    $region88: #{tpu_custom_call.1} parent=1 // pred_region
      %908 = dma.done [#allocation16], 128
    $region89: #{tpu_custom_call.1} parent=1 // pred_fallthru
      _
    %909 = vsyncpa [#allocation3], 1
    %910 = vsyncpa [#allocation6], 1
    %911 = vsyncpa [#allocation9], 1
    %912 = vsyncpa [#allocation12], 1
    %913 = vsyncpa [#allocation4], 1
    %914 = vsyncpa [#allocation16], 1

</llo_original>
